<compile_context>
chip_gen: v6e
topology: v6e:2x2x1
jax: 0.10.0
libtpu: 0.0.40
codegen_flags: <defaults>
</compile_context>

<pallas_src>
import functools

import jax
import jax.numpy as jnp
from jax.experimental import pallas as pl
from jax.experimental.pallas import tpu as pltpu

_LANE = 128
_SUB = 8


def _round_up(x, m):
    return ((x + m - 1) // m) * m


# ---------------------------------------------------------------------------
# Kernel
# ---------------------------------------------------------------------------
def _qsdt_kernel(x_ref, w_ref, b_ref, *refs, num_experts, n_eo_pad,
                 num_k_steps, uniform_gate):
    """Fused gating + expert-mixture kernel (one main MXU matmul).

    x_ref  : (tB, tK)           bf16 input tile
    w_ref  : (tK, n_tot)        bf16 packed, pre-transposed weights:
                                [E*O expert cols (padded to n_eo_pad) | e_pad gating cols]
    b_ref  : (1, n_tot)         f32 packed biases (gating pad cols hold -1e30)
    s_ref  : (e_pad, n_eo_pad)  f32 0/1 gate-expansion selector (softmax path only)
    r_ref  : (n_eo_pad, o_pad)  f32 0/1 per-output segment-sum reducer
    out_ref: (tB, o_pad)        f32 lane-dense output (cols >= O are padding)
    y_acc  : (tB, n_tot)        f32 accumulator scratch (only when num_k_steps > 1)
    """
    refs = list(refs)
    y_acc = refs.pop() if num_k_steps > 1 else None
    out_ref = refs.pop()
    r_ref = refs.pop()
    s_ref = None if uniform_gate else refs.pop()

    def epilogue(y):
        y_e = y[:, :n_eo_pad]                               # contiguous E*O expert cols
        if uniform_gate:
            # num_nodes == 1: uniform 1/E gating, no gating matmul / softmax.
            mix = y_e * (1.0 / num_experts)
        else:
            # softmax over the trailing lane-aligned gating chunk
            logits = y[:, n_eo_pad:]
            logits = logits - jnp.max(logits, axis=1, keepdims=True)
            g = jnp.exp(logits)                             # pad cols (-1e30 bias) -> 0
            gate = g * pl.reciprocal(jnp.sum(g, axis=1, keepdims=True),
                                     approx=False)          # exact softmax parity
            # Expand gate over each expert's O output columns with a tiny MXU
            # matmul (avoids a (B, E*O) -> (B, E, O) VMEM relayout).
            gate_x = jnp.dot(gate, s_ref[...], preferred_element_type=jnp.float32)
            mix = gate_x * y_e                              # VPU
        # Segment-sum the E*O weighted columns down to the O output columns.
        out_ref[...] = jnp.dot(mix, r_ref[...],
                               preferred_element_type=jnp.float32
                               ).astype(out_ref.dtype)

    # One bf16 MXU matmul covering every expert head (+ gating head).
    partial_y = jnp.dot(x_ref[...], w_ref[...],
                        preferred_element_type=jnp.float32)

    if num_k_steps == 1:
        epilogue(partial_y + b_ref[...])
    else:
        k = pl.program_id(1)

        @pl.when(k == 0)
        def _():
            y_acc[...] = jnp.zeros_like(y_acc)

        y_acc[...] += partial_y

        @pl.when(k == num_k_steps - 1)
        def _():
            epilogue(y_acc[...] + b_ref[...])


# ---------------------------------------------------------------------------
# One-time parameter packing (hoist out of the per-forward path)
# ---------------------------------------------------------------------------
def pack_qsdt_params(gating_weights, gating_biases, expert_weights,
                     expert_biases, num_nodes, *, weight_dtype=jnp.bfloat16):
    """Pack + pre-transpose all weights for the fused kernel.

    Call once per parameter update (or let it fold into jit constants); it
    relayouts every weight tensor and must not sit on the per-forward path.
    """
    E, O, I = expert_weights.shape
    n_eo = E * O
    n_eo_pad = _round_up(n_eo, _LANE)
    o_pad = _round_up(O, _LANE)
    uniform = (num_nodes == 1)

    # experts: (E, O, I) -> (I, E*O) contiguous; pad only the combined block.
    w_exp = jnp.transpose(expert_weights, (2, 0, 1)).reshape(I, n_eo)
    w_exp = jnp.pad(w_exp, ((0, 0), (0, n_eo_pad - n_eo)))
    b_exp = jnp.pad(expert_biases.reshape(1, n_eo),
                    ((0, 0), (0, n_eo_pad - n_eo)))

    if uniform:
        e_pad = 0
        w_packed, b_packed, sel = w_exp, b_exp, None
    else:
        e_pad = _round_up(E, _LANE)
        gw = gating_weights[num_nodes - 2]                     # (E, I)
        gb = gating_biases[num_nodes - 2]                      # (E,)
        gw_t = jnp.pad(gw.T, ((0, 0), (0, e_pad - E)))         # (I, e_pad)
        # -1e30 pad bias masks the pad lanes out of the softmax.  Kept in f32
        # (do NOT cast the bias slab to f16/fp8).
        gb_p = jnp.pad(gb, (0, e_pad - E),
                       constant_values=-1e30).reshape(1, e_pad)
        w_packed = jnp.concatenate([w_exp, gw_t], axis=1)
        b_packed = jnp.concatenate([b_exp, gb_p], axis=1)
        # gate-expansion selector: sel[j, j*O + o] = 1
        cols = jnp.arange(n_eo_pad)
        col_expert = jnp.where(cols < n_eo, cols // O, -1)
        sel = (col_expert[None, :] == jnp.arange(e_pad)[:, None]
               ).astype(jnp.float32)

    # segment-sum reducer: red[j*O + o, o] = 1
    rows = jnp.arange(n_eo_pad)
    row_out = jnp.where(rows < n_eo, rows % O, -1)
    red = (row_out[:, None] == jnp.arange(o_pad)[None, :]).astype(jnp.float32)

    return dict(
        w=w_packed.astype(weight_dtype),   # bf16: halves VMEM/DMA, ~2x MXU rate
        b=b_packed.astype(jnp.float32),    # tiny; keep f32 for the -1e30 pad bias
        sel=sel,
        red=red,
        num_experts=E,
        input_size=I,
        output_size=O,
        n_eo_pad=n_eo_pad,
        e_pad=e_pad,
        o_pad=o_pad,
        uniform=uniform,
    )


# ---------------------------------------------------------------------------
# Tiling / VMEM heuristics
# ---------------------------------------------------------------------------
def _vmem_limit_bytes():
    # Derive the scoped-VMEM limit from the device instead of a hard-coded
    # 32 MiB: ~3/4 of physical (96 MiB on v5e/v6e, 48 MiB on v7x's 64 MiB).
    try:
        phys = pltpu.get_tpu_info().vmem_capacity_bytes
    except Exception:  # query unavailable (interpret mode / older runtime)
        phys = 64 * 1024 * 1024
    return int(phys) * 3 // 4


def _pick_tile_k(input_size, n_tot, weight_budget_bytes):
    """K-tile so the streamed (double-buffered bf16) weight block fits VMEM."""
    def slab(tk):
        return 2 * tk * n_tot * 2
    if input_size % _LANE != 0 or slab(input_size) <= weight_budget_bytes:
        return input_size
    best = _LANE
    for tk in range(_LANE, input_size, _LANE):
        if input_size % tk == 0 and slab(tk) <= weight_budget_bytes:
            best = tk
    return best


def _pick_tile_b(batch, max_rows):
    """Largest multiple-of-8 divisor of batch within budget; prefer >= 2 grid
    steps (v7x has 2 TensorCores) when the batch allows it."""
    cap = max(_SUB, min(max_rows, batch))
    if batch >= 2 * _SUB:
        cap = min(cap, max(_SUB, (batch // 2) // _SUB * _SUB))
    t = (cap // _SUB) * _SUB
    while t >= _SUB:
        if batch % t == 0:
            return t
        t -= _SUB
    return batch


# ---------------------------------------------------------------------------
# Forward
# ---------------------------------------------------------------------------
def qsdt_forward(x, packed, *, tile_b=None):
    """Fused forward.  `packed` comes from pack_qsdt_params (hoisted packing)."""
    B, I = x.shape
    assert I == packed["input_size"]
    E = packed["num_experts"]
    O = packed["output_size"]
    n_eo_pad = packed["n_eo_pad"]
    e_pad = packed["e_pad"]
    o_pad = packed["o_pad"]
    uniform = packed["uniform"]
    w, bias, sel, red = packed["w"], packed["b"], packed["sel"], packed["red"]
    n_tot = w.shape[1]

    x_lp = x.astype(w.dtype)                      # bf16 input tile: halves DMA

    vmem_limit = _vmem_limit_bytes()

    # --- tiling --------------------------------------------------------------
    tile_k = _pick_tile_k(I, n_tot, vmem_limit // 3)
    nk = I // tile_k

    # Budget the batch tile explicitly, including the materialized f32 y row
    # (the review's hidden-scratch concern on v7x).
    per_row = (2 * tile_k * 2                      # x tile, bf16, 2 buffers
               + 2 * o_pad * 4                     # out tile, f32, 2 buffers
               + n_tot * 4 * (2 if nk > 1 else 1)) # y (+ accumulator scratch)
    fixed = (2 * tile_k * n_tot * 2                # weight block (2 buffers, bf16)
             + 2 * n_tot * 4                       # bias
             + (e_pad * n_eo_pad + n_eo_pad * o_pad) * 4 * 2)  # sel / red
    budget_rows = max(_SUB, (int(vmem_limit * 0.6) - fixed) // max(per_row, 1))
    if tile_b is None:
        tile_b = min(1024, budget_rows)            # big tiles amortize ~0.35us/step
    tile_b = _pick_tile_b(B, min(tile_b, budget_rows))
    grid = (B // tile_b, nk)

    kernel = functools.partial(_qsdt_kernel, num_experts=E, n_eo_pad=n_eo_pad,
                               num_k_steps=nk, uniform_gate=uniform)

    cost = pl.CostEstimate(
        flops=(2 * B * I * n_tot
               + (0 if uniform else 2 * B * e_pad * n_eo_pad)
               + 2 * B * n_eo_pad * o_pad),
        transcendentals=0 if uniform else B * e_pad,
        bytes_accessed=(x_lp.size * 2 + w.size * 2 + bias.size * 4
                        + (0 if sel is None else sel.size * 4)
                        + red.size * 4 + B * o_pad * 4),
    )

    def run(single_buffer_resident):
        # Constant-index blocks (bias, selectors, and the weights when K isn't
        # tiled) don't need Pallas' default double buffer -> Buffered(1) halves
        # their VMEM footprint.
        def resident(shape):
            kw = ({"pipeline_mode": pl.Buffered(1)}
                  if single_buffer_resident else {})
            return pl.BlockSpec(shape, lambda b, k: (0, 0), **kw)

        if nk == 1 and single_buffer_resident:
            w_spec = pl.BlockSpec((tile_k, n_tot), lambda b, k: (k, 0),
                                  pipeline_mode=pl.Buffered(1))
        else:
            w_spec = pl.BlockSpec((tile_k, n_tot), lambda b, k: (k, 0))

        # x tile: batch- and K-tiled.  (If the x DMA is ever exposed on v7x,
        # sweep pipeline_mode=pl.Buffered(3) here.)
        in_specs = [pl.BlockSpec((tile_b, tile_k), lambda b, k: (b, k)),
                    w_spec,
                    resident((1, n_tot))]
        operands = [x_lp, w, bias]
        if not uniform:
            in_specs.append(resident((e_pad, n_eo_pad)))
            operands.append(sel)
        in_specs.append(resident((n_eo_pad, o_pad)))
        operands.append(red)

        scratch = [] if nk == 1 else [pltpu.VMEM((tile_b, n_tot), jnp.float32)]

        return pl.pallas_call(
            kernel,
            out_shape=jax.ShapeDtypeStruct((B, o_pad), jnp.float32),
            grid_spec=pltpu.PrefetchScalarGridSpec(
                num_scalar_prefetch=0,
                grid=grid,
                in_specs=in_specs,
                out_specs=pl.BlockSpec((tile_b, o_pad), lambda b, k: (b, 0)),
                scratch_shapes=scratch,
            ),
            compiler_params=pltpu.CompilerParams(
                dimension_semantics=("parallel", "arbitrary"),
                vmem_limit_bytes=vmem_limit,
            ),
            cost_estimate=cost,
        )(*operands)

    try:
        out_padded = run(True)
    except Exception:
        # pl.Buffered(1) on revisited blocks may be unsupported on some jax
        # builds; fall back to default double-buffering (identical results).
        out_padded = run(False)

    return out_padded[:, :O]


def quantum_soft_decision_tree(x, gating_weights, gating_biases,
                               expert_weights, expert_biases, num_nodes,
                               *, tile_b=None):
    """Convenience wrapper (packs then runs).  In production, hoist
    pack_qsdt_params out of the per-forward path."""
    packed = pack_qsdt_params(gating_weights, gating_biases, expert_weights,
                              expert_biases, num_nodes)
    return qsdt_forward(x, packed, tile_b=tile_b)


# ---------------------------------------------------------------------------
# Pure-JAX reference mirroring the PyTorch forward
# ---------------------------------------------------------------------------
def _reference(x, gating_weights, gating_biases, expert_weights, expert_biases,
               num_nodes):
    B = x.shape[0]
    num_experts = expert_weights.shape[0]
    gates = [jnp.ones((B, num_experts), jnp.float32) / num_experts]
    out = None
    for i in range(num_nodes):
        expert_outs = [x @ expert_weights[j].T + expert_biases[j]
                       for j in range(num_experts)]
        out = sum(gates[i][:, j:j + 1] * expert_outs[j]
                  for j in range(num_experts))
        gates.append(jax.nn.softmax(x @ gating_weights[i].T + gating_biases[i],
                                    axis=1))
    return out


if __name__ == "__main__":
    # Small shapes consistent with the module: x is (batch, input_size).
    batch, input_size, output_size = 16, 32, 16
    num_nodes, num_experts, num_qubits = 3, 4, 4   # num_qubits unused classically

    key = jax.random.PRNGKey(0)
    kx, kgw, kgb, kew, keb = jax.random.split(key, 5)

    # PyTorch-Linear-like uniform init: U(-1/sqrt(in), 1/sqrt(in))
    bound = 1.0 / (input_size ** 0.5)
    x = jax.random.normal(kx, (batch, input_size), jnp.float32)
    gating_w = jax.random.uniform(kgw, (num_nodes, num_experts, input_size),
                                  jnp.float32, -bound, bound)
    gating_b = jax.random.uniform(kgb, (num_nodes, num_experts),
                                  jnp.float32, -bound, bound)
    expert_w = jax.random.uniform(kew, (num_experts, output_size, input_size),
                                  jnp.float32, -bound, bound)
    expert_b = jax.random.uniform(keb, (num_experts, output_size),
                                  jnp.float32, -bound, bound)

    # Multi-node path (softmax gating).  Packing is hoisted; the auto-picked
    # tile_b gives a 2-step batch grid (exercises pipelining / 2-TC sharding).
    packed = pack_qsdt_params(gating_w, gating_b, expert_w, expert_b, num_nodes)
    out = jax.block_until_ready(qsdt_forward(x, packed))
    ref = _reference(x, gating_w, gating_b, expert_w, expert_b, num_nodes)
    assert out.shape == (batch, output_size)
    # bf16 weights/inputs (f32 MXU accumulation) -> slightly loose tolerance.
    assert jnp.allclose(out, ref, atol=2e-2, rtol=2e-2), "mismatch vs reference"

    # num_nodes == 1 path (uniform gating variant; no gating matmul / softmax).
    packed1 = pack_qsdt_params(gating_w, gating_b, expert_w, expert_b, 1)
    out1 = jax.block_until_ready(qsdt_forward(x, packed1))
    ref1 = _reference(x, gating_w, gating_b, expert_w, expert_b, 1)
    assert jnp.allclose(out1, ref1, atol=2e-2, rtol=2e-2), "mismatch (uniform)"

    print("KERNEL_OK")
</pallas_src>

<mosaic_0001>
module attributes {stable_mosaic.version = 11 : i64} {
  func.func @_qsdt_kernel(%arg0: i32, %arg1: i32, %arg2: memref<8x32xbf16, #tpu.memory_space<vmem>>, %arg3: memref<32x256xbf16, #tpu.memory_space<vmem>>, %arg4: memref<1x256xf32, #tpu.memory_space<vmem>>, %arg5: memref<128x128xf32, #tpu.memory_space<vmem>>, %arg6: memref<128x128xf32, #tpu.memory_space<vmem>>, %arg7: memref<8x128xf32, #tpu.memory_space<vmem>>) attributes {dimension_semantics = [#tpu.dimension_semantics<parallel>, #tpu.dimension_semantics<arbitrary>], iteration_bounds = array<i64: 2, 1>, scalar_prefetch = 0 : i64, scratch_operands = 0 : i64, tpu.core_type = #tpu.core_type<tc>, window_params = [{transform_indices = @transform_0, window_bounds = array<i64: 8, 32>}, {pipeline_mode = #tpu.pipeline_mode<synchronous>, transform_indices = @transform_1, window_bounds = array<i64: 32, 256>}, {pipeline_mode = #tpu.pipeline_mode<synchronous>, transform_indices = @transform_2, window_bounds = array<i64: 1, 256>}, {pipeline_mode = #tpu.pipeline_mode<synchronous>, transform_indices = @transform_3, window_bounds = array<i64: 128, 128>}, {pipeline_mode = #tpu.pipeline_mode<synchronous>, transform_indices = @transform_4, window_bounds = array<i64: 128, 128>}, {transform_indices = @transform_5, window_bounds = array<i64: 8, 128>}]} {
    %c0 = arith.constant 0 : index
    %c0_0 = arith.constant 0 : index
    %0 = vector.load %arg2[%c0, %c0_0] : memref<8x32xbf16, #tpu.memory_space<vmem>>, vector<8x32xbf16>
    %c0_1 = arith.constant 0 : index
    %c0_2 = arith.constant 0 : index
    %1 = vector.load %arg3[%c0_1, %c0_2] : memref<32x256xbf16, #tpu.memory_space<vmem>>, vector<32x256xbf16>
    %cst = arith.constant dense<0.000000e+00> : vector<8x256xf32>
    %2 = tpu.matmul %0, %1, %cst {dimension_numbers = #tpu.dot_dimension_numbers<[1], [0], [0], [1], [0, 0, 1, 1], [], []>} : vector<8x32xbf16>, vector<32x256xbf16>, vector<8x256xf32> -> vector<8x256xf32>
    %c0_3 = arith.constant 0 : index
    %c0_4 = arith.constant 0 : index
    %3 = vector.load %arg4[%c0_3, %c0_4] : memref<1x256xf32, #tpu.memory_space<vmem>>, vector<1x256xf32>
    %4 = vector.broadcast %3 : vector<1x256xf32> to vector<8x256xf32>
    %5 = arith.addf %2, %4 : vector<8x256xf32>
    %6 = vector.extract_strided_slice %5 {offsets = [0, 0], sizes = [8, 128], strides = [1, 1]} : vector<8x256xf32> to vector<8x128xf32>
    %7 = vector.extract_strided_slice %5 {offsets = [0, 128], sizes = [8, 128], strides = [1, 1]} : vector<8x256xf32> to vector<8x128xf32>
    %cst_5 = arith.constant dense<0xFF800000> : vector<8xf32>
    %8 = vector.multi_reduction <maximumf>, %7, %cst_5 [1] : vector<8x128xf32> to vector<8xf32>
    %9 = vector.shape_cast %8 : vector<8xf32> to vector<8x1xf32>
    %10 = vector.broadcast %9 : vector<8x1xf32> to vector<8x128xf32>
    %11 = arith.subf %7, %10 : vector<8x128xf32>
    %12 = math.exp %11 : vector<8x128xf32>
    %cst_6 = arith.constant dense<0.000000e+00> : vector<8xf32>
    %13 = vector.multi_reduction <add>, %12, %cst_6 [1] : vector<8x128xf32> to vector<8xf32>
    %14 = vector.shape_cast %13 : vector<8xf32> to vector<8x1xf32>
    %15 = tpu.reciprocal %14 : vector<8x1xf32> -> vector<8x1xf32>
    %16 = vector.broadcast %15 : vector<8x1xf32> to vector<8x128xf32>
    %17 = arith.mulf %12, %16 : vector<8x128xf32>
    %c0_7 = arith.constant 0 : index
    %c0_8 = arith.constant 0 : index
    %18 = vector.load %arg5[%c0_7, %c0_8] : memref<128x128xf32, #tpu.memory_space<vmem>>, vector<128x128xf32>
    %cst_9 = arith.constant dense<0.000000e+00> : vector<8x128xf32>
    %19 = tpu.matmul %17, %18, %cst_9 {dimension_numbers = #tpu.dot_dimension_numbers<[1], [0], [0], [1], [0, 0, 1, 1], [], []>} : vector<8x128xf32>, vector<128x128xf32>, vector<8x128xf32> -> vector<8x128xf32>
    %20 = arith.mulf %19, %6 : vector<8x128xf32>
    %c0_10 = arith.constant 0 : index
    %c0_11 = arith.constant 0 : index
    %21 = vector.load %arg6[%c0_10, %c0_11] : memref<128x128xf32, #tpu.memory_space<vmem>>, vector<128x128xf32>
    %cst_12 = arith.constant dense<0.000000e+00> : vector<8x128xf32>
    %22 = tpu.matmul %20, %21, %cst_12 {dimension_numbers = #tpu.dot_dimension_numbers<[1], [0], [0], [1], [0, 0, 1, 1], [], []>} : vector<8x128xf32>, vector<128x128xf32>, vector<8x128xf32> -> vector<8x128xf32>
    %c0_13 = arith.constant 0 : index
    %c0_14 = arith.constant 0 : index
    %23 = vector.load %arg7[%c0_13, %c0_14] : memref<8x128xf32, #tpu.memory_space<vmem>>, vector<8x128xf32>
    tpu.vector_store %arg7[%c0_13, %c0_14], %22 {strides = array<i32>} : memref<8x128xf32, #tpu.memory_space<vmem>>, vector<8x128xf32>,
    return
  }
  func.func @transform_0(%arg0: i32, %arg1: i32) -> (i32, i32) {
    %c0_i32 = arith.constant 0 : i32
    return %arg0, %arg1 : i32, i32
  }
  func.func @transform_1(%arg0: i32, %arg1: i32) -> (i32, i32) {
    %c0_i32 = arith.constant 0 : i32
    %c0_i32_0 = arith.constant 0 : i32
    return %arg1, %c0_i32 : i32, i32
  }
  func.func @transform_2(%arg0: i32, %arg1: i32) -> (i32, i32) {
    %c0_i32 = arith.constant 0 : i32
    %c0_i32_0 = arith.constant 0 : i32
    %c0_i32_1 = arith.constant 0 : i32
    return %c0_i32, %c0_i32_0 : i32, i32
  }
  func.func @transform_3(%arg0: i32, %arg1: i32) -> (i32, i32) {
    %c0_i32 = arith.constant 0 : i32
    %c0_i32_0 = arith.constant 0 : i32
    %c0_i32_1 = arith.constant 0 : i32
    return %c0_i32, %c0_i32_0 : i32, i32
  }
  func.func @transform_4(%arg0: i32, %arg1: i32) -> (i32, i32) {
    %c0_i32 = arith.constant 0 : i32
    %c0_i32_0 = arith.constant 0 : i32
    %c0_i32_1 = arith.constant 0 : i32
    return %c0_i32, %c0_i32_0 : i32, i32
  }
  func.func @transform_5(%arg0: i32, %arg1: i32) -> (i32, i32) {
    %c0_i32 = arith.constant 0 : i32
    %c0_i32_0 = arith.constant 0 : i32
    return %arg0, %c0_i32 : i32, i32
  }
}

module attributes {stable_mosaic.version = 11 : i64} {
  func.func @_qsdt_kernel(%arg0: i32, %arg1: i32, %arg2: memref<8x32xbf16, #tpu.memory_space<vmem>>, %arg3: memref<32x256xbf16, #tpu.memory_space<vmem>>, %arg4: memref<1x256xf32, #tpu.memory_space<vmem>>, %arg5: memref<128x128xf32, #tpu.memory_space<vmem>>, %arg6: memref<128x128xf32, #tpu.memory_space<vmem>>, %arg7: memref<8x128xf32, #tpu.memory_space<vmem>>) attributes {dimension_semantics = [#tpu.dimension_semantics<parallel>, #tpu.dimension_semantics<arbitrary>], iteration_bounds = array<i64: 2, 1>, scalar_prefetch = 0 : i64, scratch_operands = 0 : i64, tpu.core_type = #tpu.core_type<tc>, window_params = [{transform_indices = @transform_0, window_bounds = array<i64: 8, 32>}, {transform_indices = @transform_1, window_bounds = array<i64: 32, 256>}, {pipeline_mode = #tpu.pipeline_mode<synchronous>, transform_indices = @transform_2, window_bounds = array<i64: 1, 256>}, {pipeline_mode = #tpu.pipeline_mode<synchronous>, transform_indices = @transform_3, window_bounds = array<i64: 128, 128>}, {pipeline_mode = #tpu.pipeline_mode<synchronous>, transform_indices = @transform_4, window_bounds = array<i64: 128, 128>}, {transform_indices = @transform_5, window_bounds = array<i64: 8, 128>}]} {
    %c0 = arith.constant 0 : index
    %c0_0 = arith.constant 0 : index
    %0 = vector.load %arg2[%c0, %c0_0] : memref<8x32xbf16, #tpu.memory_space<vmem>>, vector<8x32xbf16>
    %c0_1 = arith.constant 0 : index
    %c0_2 = arith.constant 0 : index
    %1 = vector.load %arg3[%c0_1, %c0_2] : memref<32x256xbf16, #tpu.memory_space<vmem>>, vector<32x256xbf16>
    %cst = arith.constant dense<0.000000e+00> : vector<8x256xf32>
    %2 = tpu.matmul %0, %1, %cst {dimension_numbers = #tpu.dot_dimension_numbers<[1], [0], [0], [1], [0, 0, 1, 1], [], []>} : vector<8x32xbf16>, vector<32x256xbf16>, vector<8x256xf32> -> vector<8x256xf32>
    %c0_3 = arith.constant 0 : index
    %c0_4 = arith.constant 0 : index
    %3 = vector.load %arg4[%c0_3, %c0_4] : memref<1x256xf32, #tpu.memory_space<vmem>>, vector<1x256xf32>
    %4 = vector.broadcast %3 : vector<1x256xf32> to vector<8x256xf32>
    %5 = arith.addf %2, %4 : vector<8x256xf32>
    %6 = vector.extract_strided_slice %5 {offsets = [0, 0], sizes = [8, 128], strides = [1, 1]} : vector<8x256xf32> to vector<8x128xf32>
    %7 = vector.extract_strided_slice %5 {offsets = [0, 128], sizes = [8, 128], strides = [1, 1]} : vector<8x256xf32> to vector<8x128xf32>
    %cst_5 = arith.constant dense<0xFF800000> : vector<8xf32>
    %8 = vector.multi_reduction <maximumf>, %7, %cst_5 [1] : vector<8x128xf32> to vector<8xf32>
    %9 = vector.shape_cast %8 : vector<8xf32> to vector<8x1xf32>
    %10 = vector.broadcast %9 : vector<8x1xf32> to vector<8x128xf32>
    %11 = arith.subf %7, %10 : vector<8x128xf32>
    %12 = math.exp %11 : vector<8x128xf32>
    %cst_6 = arith.constant dense<0.000000e+00> : vector<8xf32>
    %13 = vector.multi_reduction <add>, %12, %cst_6 [1] : vector<8x128xf32> to vector<8xf32>
    %14 = vector.shape_cast %13 : vector<8xf32> to vector<8x1xf32>
    %15 = tpu.reciprocal %14 : vector<8x1xf32> -> vector<8x1xf32>
    %16 = vector.broadcast %15 : vector<8x1xf32> to vector<8x128xf32>
    %17 = arith.mulf %12, %16 : vector<8x128xf32>
    %c0_7 = arith.constant 0 : index
    %c0_8 = arith.constant 0 : index
    %18 = vector.load %arg5[%c0_7, %c0_8] : memref<128x128xf32, #tpu.memory_space<vmem>>, vector<128x128xf32>
    %cst_9 = arith.constant dense<0.000000e+00> : vector<8x128xf32>
    %19 = tpu.matmul %17, %18, %cst_9 {dimension_numbers = #tpu.dot_dimension_numbers<[1], [0], [0], [1], [0, 0, 1, 1], [], []>} : vector<8x128xf32>, vector<128x128xf32>, vector<8x128xf32> -> vector<8x128xf32>
    %20 = arith.mulf %19, %6 : vector<8x128xf32>
    %c0_10 = arith.constant 0 : index
    %c0_11 = arith.constant 0 : index
    %21 = vector.load %arg6[%c0_10, %c0_11] : memref<128x128xf32, #tpu.memory_space<vmem>>, vector<128x128xf32>
    %cst_12 = arith.constant dense<0.000000e+00> : vector<8x128xf32>
    %22 = tpu.matmul %20, %21, %cst_12 {dimension_numbers = #tpu.dot_dimension_numbers<[1], [0], [0], [1], [0, 0, 1, 1], [], []>} : vector<8x128xf32>, vector<128x128xf32>, vector<8x128xf32> -> vector<8x128xf32>
    %c0_13 = arith.constant 0 : index
    %c0_14 = arith.constant 0 : index
    %23 = vector.load %arg7[%c0_13, %c0_14] : memref<8x128xf32, #tpu.memory_space<vmem>>, vector<8x128xf32>
    tpu.vector_store %arg7[%c0_13, %c0_14], %22 {strides = array<i32>} : memref<8x128xf32, #tpu.memory_space<vmem>>, vector<8x128xf32>,
    return
  }
  func.func @transform_0(%arg0: i32, %arg1: i32) -> (i32, i32) {
    %c0_i32 = arith.constant 0 : i32
    return %arg0, %arg1 : i32, i32
  }
  func.func @transform_1(%arg0: i32, %arg1: i32) -> (i32, i32) {
    %c0_i32 = arith.constant 0 : i32
    %c0_i32_0 = arith.constant 0 : i32
    return %arg1, %c0_i32 : i32, i32
  }
  func.func @transform_2(%arg0: i32, %arg1: i32) -> (i32, i32) {
    %c0_i32 = arith.constant 0 : i32
    %c0_i32_0 = arith.constant 0 : i32
    %c0_i32_1 = arith.constant 0 : i32
    return %c0_i32, %c0_i32_0 : i32, i32
  }
  func.func @transform_3(%arg0: i32, %arg1: i32) -> (i32, i32) {
    %c0_i32 = arith.constant 0 : i32
    %c0_i32_0 = arith.constant 0 : i32
    %c0_i32_1 = arith.constant 0 : i32
    return %c0_i32, %c0_i32_0 : i32, i32
  }
  func.func @transform_4(%arg0: i32, %arg1: i32) -> (i32, i32) {
    %c0_i32 = arith.constant 0 : i32
    %c0_i32_0 = arith.constant 0 : i32
    %c0_i32_1 = arith.constant 0 : i32
    return %c0_i32, %c0_i32_0 : i32, i32
  }
  func.func @transform_5(%arg0: i32, %arg1: i32) -> (i32, i32) {
    %c0_i32 = arith.constant 0 : i32
    %c0_i32_0 = arith.constant 0 : i32
    return %arg0, %c0_i32 : i32, i32
  }
}

</mosaic_0001>

<llo_original>
// kernel: tpu_custom_call.1
$region0: #{tpu_custom_call.1}
  #allocation0 [shape = 'u32[]', space=smem, size = 0x4, offset = 0x4, fixed_abs, tag = 'smem constant byte address 0x4 - core index']
  #allocation1 [shape = 'u32[144,128]{1,0:T(1,128)}', space=vmem, size = 0x12000, scoped, tag = 'internal scratch']
  %s0 = inlined_call_operand.hbm [shape: bf16[16,32], index: 0, kind: input, shape index: {}]
  %s1 = inlined_call_operand.hbm [shape: bf16[32,256], index: 1, kind: input, shape index: {}]
  %s2 = inlined_call_operand.vmem [shape: f32[1,256], index: 2, kind: input, shape index: {}]
  %s3 = inlined_call_operand.hbm [shape: f32[128,128], index: 3, kind: input, shape index: {}]
  %s4 = inlined_call_operand.hbm [shape: f32[128,128], index: 4, kind: input, shape index: {}]
  %s5 = inlined_call_operand.hbm [shape: f32[16,128], index: 5, kind: output, shape index: {}]
  %s6 = sld [smem:[#allocation0]]
  $region69: #{tpu_custom_call.1} parent=0
    _
  %s8 = ssub.s32 1, %s6
  %s9 = scalar_select 0, %s8, %s6
  $region1: #{tpu_custom_call.1} parent=0
    #allocation2 [shape = 'u8[4096]{0}', space=vmem, size = 0x1000, scoped, tag = 'input window, operand 0']
    #allocation3 [shape = 's32[2]{0}', space=sflag, size = 0x8, scoped, tag = 'scoped memory for tpu_custom_call.1']
    #allocation4 [shape = 's32[2]{0}', space=sflag, size = 0x8, scoped, tag = 'scoped memory for tpu_custom_call.1']
    #allocation5 [shape = 'u8[16384]{0}', space=vmem, size = 0x4000, scoped, tag = 'input window, operand 1, single buffered']
    #allocation6 [shape = 's32[1]{0}', space=sflag, size = 0x4, scoped, tag = 'scoped memory for tpu_custom_call.1']
    #allocation7 [shape = 'u8[65536]{0}', space=vmem, size = 0x10000, scoped, tag = 'input window, operand 3, single buffered']
    #allocation8 [shape = 'u8[65536]{0}', space=vmem, size = 0x10000, scoped, tag = 'input window, operand 4, single buffered']
    #allocation9 [shape = 's32[1]{0}', space=sflag, size = 0x4, scoped, tag = 'scoped memory for tpu_custom_call.1']
    #allocation10 [shape = 'u8[8192]{0}', space=vmem, size = 0x2000, scoped, tag = 'output window, operand 0']
    %10 = vsyncpa [#allocation3], 0
    %s11 = scalar_lea.sflag [#allocation3], 1
    %12 = vsyncpa %s11, 0
    %13 = vsyncpa [#allocation6], 0
    %14 = vsyncpa [#allocation9], 0
    %15 = vsyncpa [#allocation4], 0
    %s16 = scalar_lea.sflag [#allocation4], 1
    %17 = vsyncpa %s16, 0
    loop: start=0, step=1, limit=4
    $region2: #{tpu_custom_call.1} parent=1 // loop_pre_header
      _
    $region3: #{tpu_custom_call.1} parent=1 // loop_header
      %s19 = sphi 0, %s23
      %p20 = scmp.ge.s32.totalorder %s19, 4
      %s26 = sphi 0, %s38
      %s27 = sphi 0, %s34
      %s28 = sphi 0, %s26
      %s29 = sphi 0, %s27
      %s30 = sphi 0, %s28
      %s31 = sphi 0, %s29
      %s43 = sphi 0, %s45
      %s46 = sphi 0, %s43
      %s47 = sphi 0, %s46
      %s63 = sphi 0, %s47
      %s69 = sphi 0, %s71
      %s72 = sphi 0, %s69
      %s73 = sphi 0, %s72
      %s89 = sphi 0, %s73
      %s93 = sphi 0, %s93
      %s95 = sphi 0, %s93
      %s96 = sphi 0, %s95
      %s110 = sphi 0, %s96
      %s114 = sphi 0, %s114
      %s116 = sphi 0, %s114
      %s117 = sphi 0, %s116
      %s131 = sphi 0, %s117
      %s135 = sphi 0, %s135
      %s137 = sphi 0, %s135
      %s138 = sphi 0, %s137
      %s152 = sphi 0, %s138
      %s158 = sphi 0, %s160
      %s161 = sphi 0, %s158
      %s162 = sphi 0, %s161
      %s178 = sphi 0, %s162
    $region4: #{tpu_custom_call.1} parent=1 // loop_header_branch
      %22 = sbr.rel (%p20) target = $region8
    $region5: #{tpu_custom_call.1} parent=1 // loop_body
      %s24 = ssub.s32 %s19, 1
      %s25 = ssub.s32 %s19, 2
      %s32 = sadd.s32 1, %s27
      %p33 = scmp.ge.s32.totalorder %s32, 1
      %s34 = scalar_select %p33, 0, %s32
      %s35 = sadd.s32 1, %s26
      %s36 = scalar_select %p33, %s35, %s26
      %p37 = scmp.ge.s32.totalorder %s36, 2
      %s38 = scalar_select %p37, 0, %s36
      %s39 = ssub.s32 %s26, %s38
      %s40 = ssub.s32 %s27, %s34
      %s41 = sor.u32 %s39, %s40
      %p42 = scmp.eq.s32.totalorder %s41, 0
      %s44 = sadd.s32 %s43, 1
      %s45 = scalar_select %p42, %s43, %s44
      %p48 = pneg %p42
      %p49 = scmp.eq.s32.totalorder %s19, 1
      %p50 = por %p48, %p49
      %p51 = scmp.ne.s32.totalorder %s43, %s46
      %p52 = scmp.eq.s32.totalorder %s19, 0
      %p53 = por %p51, %p52
      %p54 = scmp.ne.s32.totalorder %s43, %s46
      %p55 = scmp.eq.s32.totalorder %s24, 1
      %p56 = por %p54, %p55
      %p57 = scmp.ne.s32.totalorder %s46, %s47
      %p58 = scmp.eq.s32.totalorder %s24, 0
      %p59 = por %p57, %p58
      %p60 = scmp.ne.s32.totalorder %s46, %s47
      %p61 = scmp.eq.s32.totalorder %s25, 1
      %p62 = por %p60, %p61
      %p64 = scmp.ne.s32.totalorder %s47, %s63
      %p65 = scmp.eq.s32.totalorder %s25, 0
      %p66 = por %p64, %p65
      %s67 = ssub.s32 %s27, %s34
      %p68 = scmp.eq.s32.totalorder %s67, 0
      %s70 = sadd.s32 %s69, 1
      %s71 = scalar_select %p68, %s69, %s70
      %p74 = pneg %p68
      %p75 = scmp.eq.s32.totalorder %s19, 1
      %p76 = por %p74, %p75
      %p77 = scmp.ne.s32.totalorder %s69, %s72
      %p78 = scmp.eq.s32.totalorder %s19, 0
      %p79 = por %p77, %p78
      %p80 = scmp.ne.s32.totalorder %s69, %s72
      %p81 = scmp.eq.s32.totalorder %s24, 1
      %p82 = por %p80, %p81
      %p83 = scmp.ne.s32.totalorder %s72, %s73
      %p84 = scmp.eq.s32.totalorder %s24, 0
      %p85 = por %p83, %p84
      %p86 = scmp.ne.s32.totalorder %s72, %s73
      %p87 = scmp.eq.s32.totalorder %s25, 1
      %p88 = por %p86, %p87
      %p90 = scmp.ne.s32.totalorder %s73, %s89
      %p91 = scmp.eq.s32.totalorder %s25, 0
      %p92 = por %p90, %p91
      %s94 = sadd.s32 %s93, 1
      %p97 = scmp.eq.s32.totalorder %s19, 1
      %p98 = scmp.ne.s32.totalorder %s93, %s95
      %p99 = scmp.eq.s32.totalorder %s19, 0
      %p100 = por %p98, %p99
      %p101 = scmp.ne.s32.totalorder %s93, %s95
      %p102 = scmp.eq.s32.totalorder %s24, 1
      %p103 = por %p101, %p102
      %p104 = scmp.ne.s32.totalorder %s95, %s96
      %p105 = scmp.eq.s32.totalorder %s24, 0
      %p106 = por %p104, %p105
      %p107 = scmp.ne.s32.totalorder %s95, %s96
      %p108 = scmp.eq.s32.totalorder %s25, 1
      %p109 = por %p107, %p108
      %p111 = scmp.ne.s32.totalorder %s96, %s110
      %p112 = scmp.eq.s32.totalorder %s25, 0
      %p113 = por %p111, %p112
      %s115 = sadd.s32 %s114, 1
      %p118 = scmp.eq.s32.totalorder %s19, 1
      %p119 = scmp.ne.s32.totalorder %s114, %s116
      %p120 = scmp.eq.s32.totalorder %s19, 0
      %p121 = por %p119, %p120
      %p122 = scmp.ne.s32.totalorder %s114, %s116
      %p123 = scmp.eq.s32.totalorder %s24, 1
      %p124 = por %p122, %p123
      %p125 = scmp.ne.s32.totalorder %s116, %s117
      %p126 = scmp.eq.s32.totalorder %s24, 0
      %p127 = por %p125, %p126
      %p128 = scmp.ne.s32.totalorder %s116, %s117
      %p129 = scmp.eq.s32.totalorder %s25, 1
      %p130 = por %p128, %p129
      %p132 = scmp.ne.s32.totalorder %s117, %s131
      %p133 = scmp.eq.s32.totalorder %s25, 0
      %p134 = por %p132, %p133
      %s136 = sadd.s32 %s135, 1
      %p139 = scmp.eq.s32.totalorder %s19, 1
      %p140 = scmp.ne.s32.totalorder %s135, %s137
      %p141 = scmp.eq.s32.totalorder %s19, 0
      %p142 = por %p140, %p141
      %p143 = scmp.ne.s32.totalorder %s135, %s137
      %p144 = scmp.eq.s32.totalorder %s24, 1
      %p145 = por %p143, %p144
      %p146 = scmp.ne.s32.totalorder %s137, %s138
      %p147 = scmp.eq.s32.totalorder %s24, 0
      %p148 = por %p146, %p147
      %p149 = scmp.ne.s32.totalorder %s137, %s138
      %p150 = scmp.eq.s32.totalorder %s25, 1
      %p151 = por %p149, %p150
      %p153 = scmp.ne.s32.totalorder %s138, %s152
      %p154 = scmp.eq.s32.totalorder %s25, 0
      %p155 = por %p153, %p154
      %s156 = ssub.s32 %s26, %s38
      %p157 = scmp.eq.s32.totalorder %s156, 0
      %s159 = sadd.s32 %s158, 1
      %s160 = scalar_select %p157, %s158, %s159
      %p163 = pneg %p157
      %p164 = scmp.eq.s32.totalorder %s19, 1
      %p165 = por %p163, %p164
      %p166 = scmp.ne.s32.totalorder %s158, %s161
      %p167 = scmp.eq.s32.totalorder %s19, 0
      %p168 = por %p166, %p167
      %p169 = scmp.ne.s32.totalorder %s158, %s161
      %p170 = scmp.eq.s32.totalorder %s24, 1
      %p171 = por %p169, %p170
      %p172 = scmp.ne.s32.totalorder %s161, %s162
      %p173 = scmp.eq.s32.totalorder %s24, 0
      %p174 = por %p172, %p173
      %p175 = scmp.ne.s32.totalorder %s161, %s162
      %p176 = scmp.eq.s32.totalorder %s25, 1
      %p177 = por %p175, %p176
      %p179 = scmp.ne.s32.totalorder %s162, %s178
      %p180 = scmp.eq.s32.totalorder %s25, 0
      %p181 = por %p179, %p180
      %p182 = scmp.le.s32.totalorder 1, %s19
      %p183 = scmp.lt.s32.totalorder %s19, 3
      %p184 = pnand %p182, %p183
      %p185 = pneg %p184
      // Predicated region
      $region9: #{tpu_custom_call.1} parent=5 // pred_check
        _
      $region10: #{tpu_custom_call.1} parent=5 // pred_check_branch
        %187 = sbr.rel (%p184) target = $region12
      $region11: #{tpu_custom_call.1} parent=5 // pred_region
        %s188 = ssub.s32 %s19, 1
        // Predicated region
        $region13: #{tpu_custom_call.1} parent=11 // pred_check
          %p189 = pneg %p85
        $region14: #{tpu_custom_call.1} parent=11 // pred_check_branch
          %191 = sbr.rel (%p189) target = $region16
        $region15: #{tpu_custom_call.1} parent=11 // pred_region
          %s192 = smul.u32 4, %s29
          %s194 = ssub.s32 512, 512
          %195 = vsyncadd [#allocation6], %s194
          %s196 = smul.addr %s192, 2
          %s197 = smul.addr %s196, 64
          %s198 = scalar_lea.hbm %s1, %s197
          %s199 = sshll.u32 [#allocation5], 4
          %s200 = int_to_ptr.vmem [resolvable:$true] %s199
          %205 = dma.hbm_to_vmem [thread:$0]  %s198, 512, %s200, [#allocation6], 128, 128, 8
        $region16: #{tpu_custom_call.1} parent=11 // pred_fallthru
          _
        // Predicated region
        $region17: #{tpu_custom_call.1} parent=11 // pred_check
          %p206 = pneg %p106
        $region18: #{tpu_custom_call.1} parent=11 // pred_check_branch
          %208 = sbr.rel (%p206) target = $region20
        $region19: #{tpu_custom_call.1} parent=11 // pred_region
          _
        $region20: #{tpu_custom_call.1} parent=11 // pred_fallthru
          _
        // Predicated region
        $region21: #{tpu_custom_call.1} parent=11 // pred_check
          %p209 = pneg %p127
        $region22: #{tpu_custom_call.1} parent=11 // pred_check_branch
          %211 = sbr.rel (%p209) target = $region24
        $region23: #{tpu_custom_call.1} parent=11 // pred_region
          %s213 = ssub.s32 2048, 2048
          %214 = vsyncadd [#allocation6], %s213
          %s215 = sshll.u32 [#allocation7], 4
          %s216 = int_to_ptr.vmem [resolvable:$true] %s215
          %221 = dma.hbm_to_vmem [thread:$0]  %s3, 2048, %s216, [#allocation6], 128, 128, 8
        $region24: #{tpu_custom_call.1} parent=11 // pred_fallthru
          _
        // Predicated region
        $region25: #{tpu_custom_call.1} parent=11 // pred_check
          %p222 = pneg %p148
        $region26: #{tpu_custom_call.1} parent=11 // pred_check_branch
          %224 = sbr.rel (%p222) target = $region28
        $region27: #{tpu_custom_call.1} parent=11 // pred_region
          %s226 = ssub.s32 2048, 2048
          %227 = vsyncadd [#allocation9], %s226
          %s228 = sshll.u32 [#allocation8], 4
          %s229 = int_to_ptr.vmem [resolvable:$true] %s228
          %234 = dma.hbm_to_vmem [thread:$0]  %s4, 2048, %s229, [#allocation9], 128, 128, 8
        $region28: #{tpu_custom_call.1} parent=11 // pred_fallthru
          _
      $region12: #{tpu_custom_call.1} parent=5 // pred_fallthru
        _
      %p235 = scmp.lt.s32.totalorder %s19, 2
      // Predicated region
      $region29: #{tpu_custom_call.1} parent=5 // pred_check
        %p236 = pneg %p235
      $region30: #{tpu_custom_call.1} parent=5 // pred_check_branch
        %238 = sbr.rel (%p236) target = $region32
      $region31: #{tpu_custom_call.1} parent=5 // pred_region
        // Predicated region
        $region33: #{tpu_custom_call.1} parent=31 // pred_check
          %p239 = pneg %p53
        $region34: #{tpu_custom_call.1} parent=31 // pred_check_branch
          %241 = sbr.rel (%p239) target = $region36
        $region35: #{tpu_custom_call.1} parent=31 // pred_region
          %s242 = sand.u32 %s43, 1
          %s243 = scalar_lea.sflag [#allocation3], %s242
          %s244 = sand.u32 %s43, 1
          %s245 = smul.addr %s244, 4
          %s246 = scalar_lea.vmem [#allocation2], %s245
          %s248 = ssub.s32 64, 64
          %249 = vsyncadd %s243, %s248
          %s250 = sadd.s32 %s27, %s26
          %s251 = smul.addr %s250, 64
          %s252 = scalar_lea.hbm %s0, %s251
          %s254 = sshll.u32 %s246, 4
          %s255 = int_to_ptr.vmem [resolvable:$true] %s254
          %257 = dma.hbm_to_vmem [thread:$0]  %s252, 64, %s255, %s243
        $region36: #{tpu_custom_call.1} parent=31 // pred_fallthru
          _
      $region32: #{tpu_custom_call.1} parent=5 // pred_fallthru
        _
      %p258 = scmp.le.s32.totalorder 1, %s19
      %p259 = scmp.lt.s32.totalorder %s19, 3
      %p260 = pnand %p258, %p259
      %p261 = pneg %p260
      // Predicated region
      $region37: #{tpu_custom_call.1} parent=5 // pred_check
        _
      $region38: #{tpu_custom_call.1} parent=5 // pred_check_branch
        %263 = sbr.rel (%p260) target = $region40
      $region39: #{tpu_custom_call.1} parent=5 // pred_region
        %s264 = ssub.s32 %s19, 1
        %s265 = sand.u32 %s46, 1
        %s266 = scalar_lea.sflag [#allocation3], %s265
        %s267 = sand.u32 %s46, 1
        %s268 = smul.addr %s267, 4
        %s269 = scalar_lea.vmem [#allocation2], %s268
        // Predicated region
        $region41: #{tpu_custom_call.1} parent=39 // pred_check
          %p270 = pneg %p59
        $region42: #{tpu_custom_call.1} parent=39 // pred_check_branch
          %272 = sbr.rel (%p270) target = $region44
        $region43: #{tpu_custom_call.1} parent=39 // pred_region
          %273 = dma.done %s266, 64
        $region44: #{tpu_custom_call.1} parent=39 // pred_fallthru
          _
        // Predicated region
        $region45: #{tpu_custom_call.1} parent=39 // pred_check
          %p274 = pneg %p85
        $region46: #{tpu_custom_call.1} parent=39 // pred_check_branch
          %276 = sbr.rel (%p274) target = $region48
        $region47: #{tpu_custom_call.1} parent=39 // pred_region
          %277 = dma.done [#allocation6], 512
        $region48: #{tpu_custom_call.1} parent=39 // pred_fallthru
          _
        // Predicated region
        $region49: #{tpu_custom_call.1} parent=39 // pred_check
          %p278 = pneg %p127
        $region50: #{tpu_custom_call.1} parent=39 // pred_check_branch
          %280 = sbr.rel (%p278) target = $region52
        $region51: #{tpu_custom_call.1} parent=39 // pred_region
          %281 = dma.done [#allocation6], 2048
        $region52: #{tpu_custom_call.1} parent=39 // pred_fallthru
          _
        // Predicated region
        $region53: #{tpu_custom_call.1} parent=39 // pred_check
          %p282 = pneg %p148
        $region54: #{tpu_custom_call.1} parent=39 // pred_check_branch
          %284 = sbr.rel (%p282) target = $region56
        $region55: #{tpu_custom_call.1} parent=39 // pred_region
          %285 = dma.done [#allocation9], 2048
        $region56: #{tpu_custom_call.1} parent=39 // pred_fallthru
          _
        %s286 = sand.u32 %s46, 1
        %s287 = scalar_lea.sflag [#allocation3], %s286
        %s288 = sand.u32 %s46, 1
        %s289 = smul.addr %s288, 4
        %s290 = scalar_lea.vmem [#allocation2], %s289
        %p291 = pneg %p59
        %p292 = pneg %p56
        %p293 = pneg %p85
        %p294 = pneg %p82
        %p295 = pneg %p106
        %p296 = pneg %p103
        %p297 = pneg %p127
        %p298 = pneg %p124
        %p299 = pneg %p148
        %p300 = pneg %p145
        %p301 = pneg %p174
        %p302 = pneg %p171
        %s303 = sand.u32 %s161, 1
        %s304 = scalar_lea.sflag [#allocation4], %s303
        %s305 = sand.u32 %s161, 1
        %s306 = smul.addr %s305, 8
        %s307 = scalar_lea.vmem [#allocation10], %s306
        %s308 = smul.u32 4, %s29
        %v310 = vld [vmem:[%s269] sm:$0xf]
        %v311 = vld [vmem:[#allocation5] sm:$0xff]
        %v312 = vld [vmem:[#allocation5 + $0x8] sm:$0xff]
        %v313 = vld [vmem:[#allocation5 + $0x10] sm:$0xff]
        %v314 = vld [vmem:[#allocation5 + $0x18] sm:$0xff]
        %v315 = vld [vmem:[%s2] sm:$0x3]
        %v317 = vlaneseq
        %v318 = vshrl.u32 %v317, 7
        %v319 = vsub.s32 0, %v318
        %v320 = vrot.slane %v315, %v319
        %v321 = vlaneseq
        %v322 = vshrl.u32 %v321, 7
        %v323 = vsub.s32 1, %v322
        %v324 = vrot.slane %v315, %v323
        %v331 = vunpack.c.l.b16 %v311
        %v332 = vunpack.c.h.b16 %v311
        %v333 = vunpack.c.l.b16 %v312
        %v334 = vunpack.c.h.b16 %v312
        %v335 = vunpack.c.l.b16 %v313
        %v336 = vunpack.c.h.b16 %v313
        %v337 = vunpack.c.l.b16 %v314
        %v338 = vunpack.c.h.b16 %v314
        %v339 = vpack.c.b16 %v333, %v331
        %v340 = vpack.c.b16 %v334, %v332
        %v341 = vpack.c.b16 %v337, %v335
        %v342 = vpack.c.b16 %v338, %v336
        %vm347 = vcmask 261120
        %v349 = vsel %vm347, %v310, 0
        %351 = vmatprep.subr.bf16.mxu0 0
        %352 = vmatpush1.bf16.msra.mxu0 0
        %353 = vmatprep.subr.bf16.mxu0 0
        %354 = vmatpush1.bf16.msra.mxu0 0
        %355 = vmatprep.subr.bf16.mxu0 0
        %356 = vmatpush1.bf16.msra.mxu0 0
        %357 = vmatprep.subr.bf16.mxu0 0
        %358 = vmatpush1.bf16.msra.mxu0 0
        %359 = vmatprep.subr.bf16.mxu0 0
        %360 = vmatpush1.bf16.msra.mxu0 0
        %361 = vmatprep.subr.bf16.mxu0 0
        %362 = vmatpush1.bf16.msra.mxu0 0
        %363 = vmatprep.subr.bf16.mxu0 %v342
        %364 = vmatpush1.bf16.msra.mxu0 %v341
        %365 = vmatprep.subr.bf16.mxu0 %v340
        %366 = vmatpush1.bf16.msra.mxu0 %v339
        %367 = vmatprep.subr.bf16.mxu0 0
        %368 = vmatpush2.bf16.msra.mxu0 0
        %369 = vmatprep.subr.bf16.mxu0 0
        %370 = vmatpush2.bf16.msra.mxu0 0
        %371 = vmatprep.subr.bf16.mxu0 0
        %372 = vmatpush2.bf16.msra.mxu0 0
        %373 = vmatprep.subr.bf16.mxu0 0
        %374 = vmatpush2.bf16.msra.mxu0 0
        %375 = vmatprep.subr.bf16.mxu0 0
        %376 = vmatpush2.bf16.msra.mxu0 0
        %377 = vmatprep.subr.bf16.mxu0 0
        %378 = vmatpush2.bf16.msra.mxu0 0
        %379 = vmatprep.subr.bf16.mxu0 0
        %380 = vmatpush2.bf16.msra.mxu0 0
        %381 = vmatprep.subr.bf16.mxu0 0
        %382 = vmatpush2.bf16.msra.mxu0 0
        %383 = vmatprep.mubr.bf16.mxu0 0
        %384 = vmatmul.mubr.bf16.gmra.mxu0 %v349
        %v385 = vpop.f32.mrf.mxu0
        %v386 = vadd.f32 %v320, %v385
        %v387 = vpop.f32.mrf.mxu0
        %v388 = vadd.f32 %v324, %v387
        %v389 = vpop.f32.mrf.mxu0
        %v390 = vpop.f32.mrf.mxu0
        %391 = vdwg.mxu0
        %392 = vmax.xlane.f32.xlu0 %v388
        %v393 = vpop.xlane.xlu0 %392
        %v394 = vsub.f32 %v388, %v393
        %v395 = vmul.f32 %v394, 1.442695
        %v396 = vpow.pop %v395
        %397 = vadd.xlane.f32.xlu0 %v396
        %v398 = vpop.xlane.xlu0 %397
        %v399 = vrcp.pop %v398
        %v400 = vmul.f32 %v396, %v399
        %v401 = vld [vmem:[#allocation7] sm:$0xff]
        %v402 = vld [vmem:[#allocation7 + $0x8] sm:$0xff]
        %v403 = vld [vmem:[#allocation7 + $0x10] sm:$0xff]
        %v404 = vld [vmem:[#allocation7 + $0x18] sm:$0xff]
        %v405 = vld [vmem:[#allocation7 + $0x20] sm:$0xff]
        %v406 = vld [vmem:[#allocation7 + $0x28] sm:$0xff]
        %v407 = vld [vmem:[#allocation7 + $0x30] sm:$0xff]
        %v408 = vld [vmem:[#allocation7 + $0x38] sm:$0xff]
        %v409 = vld [vmem:[#allocation7 + $0x40] sm:$0xff]
        %v410 = vld [vmem:[#allocation7 + $0x48] sm:$0xff]
        %v411 = vld [vmem:[#allocation7 + $0x50] sm:$0xff]
        %v412 = vld [vmem:[#allocation7 + $0x58] sm:$0xff]
        %v413 = vld [vmem:[#allocation7 + $0x60] sm:$0xff]
        %v414 = vld [vmem:[#allocation7 + $0x68] sm:$0xff]
        %v415 = vld [vmem:[#allocation7 + $0x70] sm:$0xff]
        %v416 = vld [vmem:[#allocation7 + $0x78] sm:$0xff]
        %417 = vmatprep.subr.mxu0 0.0
        %418 = vmatpush1.msra.mxu0 %v416
        %419 = vmatprep.subr.mxu0 0.0
        %420 = vmatpush1.msra.mxu0 %v415
        %421 = vmatprep.subr.mxu0 0.0
        %422 = vmatpush1.msra.mxu0 %v414
        %423 = vmatprep.subr.mxu0 0.0
        %424 = vmatpush1.msra.mxu0 %v413
        %425 = vmatprep.subr.mxu0 0.0
        %426 = vmatpush1.msra.mxu0 %v412
        %427 = vmatprep.subr.mxu0 0.0
        %428 = vmatpush1.msra.mxu0 %v411
        %429 = vmatprep.subr.mxu0 0.0
        %430 = vmatpush1.msra.mxu0 %v410
        %431 = vmatprep.subr.mxu0 0.0
        %432 = vmatpush1.msra.mxu0 %v409
        %433 = vmatprep.subr.mxu0 0.0
        %434 = vmatpush1.msra.mxu0 %v408
        %435 = vmatprep.subr.mxu0 0.0
        %436 = vmatpush1.msra.mxu0 %v407
        %437 = vmatprep.subr.mxu0 0.0
        %438 = vmatpush1.msra.mxu0 %v406
        %439 = vmatprep.subr.mxu0 0.0
        %440 = vmatpush1.msra.mxu0 %v405
        %441 = vmatprep.subr.mxu0 0.0
        %442 = vmatpush1.msra.mxu0 %v404
        %443 = vmatprep.subr.mxu0 0.0
        %444 = vmatpush1.msra.mxu0 %v403
        %445 = vmatprep.subr.mxu0 0.0
        %446 = vmatpush1.msra.mxu0 %v402
        %447 = vmatprep.subr.mxu0 0.0
        %448 = vmatpush1.msra.mxu0 %v401
        %449 = vmatprep.subr.mxu0 0.0
        %450 = vmatpush2.msra.mxu0 0.0
        %451 = vmatprep.subr.mxu0 0.0
        %452 = vmatpush2.msra.mxu0 0.0
        %453 = vmatprep.subr.mxu0 0.0
        %454 = vmatpush2.msra.mxu0 0.0
        %455 = vmatprep.subr.mxu0 0.0
        %456 = vmatpush2.msra.mxu0 0.0
        %457 = vmatprep.subr.mxu0 0.0
        %458 = vmatpush2.msra.mxu0 0.0
        %459 = vmatprep.subr.mxu0 0.0
        %460 = vmatpush2.msra.mxu0 0.0
        %461 = vmatprep.subr.mxu0 0.0
        %462 = vmatpush2.msra.mxu0 0.0
        %463 = vmatprep.subr.mxu0 0.0
        %464 = vmatpush2.msra.mxu0 0.0
        %465 = vmatprep.subr.mxu0 0.0
        %466 = vmatpush2.msra.mxu0 0.0
        %467 = vmatprep.subr.mxu0 0.0
        %468 = vmatpush2.msra.mxu0 0.0
        %469 = vmatprep.subr.mxu0 0.0
        %470 = vmatpush2.msra.mxu0 0.0
        %471 = vmatprep.subr.mxu0 0.0
        %472 = vmatpush2.msra.mxu0 0.0
        %473 = vmatprep.subr.mxu0 0.0
        %474 = vmatpush2.msra.mxu0 0.0
        %475 = vmatprep.subr.mxu0 0.0
        %476 = vmatpush2.msra.mxu0 0.0
        %477 = vmatprep.subr.mxu0 0.0
        %478 = vmatpush2.msra.mxu0 0.0
        %479 = vmatprep.subr.mxu0 0.0
        %480 = vmatpush2.msra.mxu0 0.0
        %481 = vmatprep.mubr.f32.mxu0 0.0
        %482 = vmatmul.mubr.f32.gmra.mxu0 %v400
        %v483 = vpop.f32.mrf.mxu0
        %v484 = vadd.f32 0.0, %v483
        %v485 = vpop.f32.mrf.mxu0
        %486 = vdwg.mxu0
        %v487 = vmul.f32 %v484, %v386
        %v488 = vld [vmem:[#allocation8] sm:$0xff]
        %v489 = vld [vmem:[#allocation8 + $0x8] sm:$0xff]
        %v490 = vld [vmem:[#allocation8 + $0x10] sm:$0xff]
        %v491 = vld [vmem:[#allocation8 + $0x18] sm:$0xff]
        %v492 = vld [vmem:[#allocation8 + $0x20] sm:$0xff]
        %v493 = vld [vmem:[#allocation8 + $0x28] sm:$0xff]
        %v494 = vld [vmem:[#allocation8 + $0x30] sm:$0xff]
        %v495 = vld [vmem:[#allocation8 + $0x38] sm:$0xff]
        %v496 = vld [vmem:[#allocation8 + $0x40] sm:$0xff]
        %v497 = vld [vmem:[#allocation8 + $0x48] sm:$0xff]
        %v498 = vld [vmem:[#allocation8 + $0x50] sm:$0xff]
        %v499 = vld [vmem:[#allocation8 + $0x58] sm:$0xff]
        %v500 = vld [vmem:[#allocation8 + $0x60] sm:$0xff]
        %v501 = vld [vmem:[#allocation8 + $0x68] sm:$0xff]
        %v502 = vld [vmem:[#allocation8 + $0x70] sm:$0xff]
        %v503 = vld [vmem:[#allocation8 + $0x78] sm:$0xff]
        %504 = vmatprep.subr.mxu0 0.0
        %505 = vmatpush1.msra.mxu0 %v503
        %506 = vmatprep.subr.mxu0 0.0
        %507 = vmatpush1.msra.mxu0 %v502
        %508 = vmatprep.subr.mxu0 0.0
        %509 = vmatpush1.msra.mxu0 %v501
        %510 = vmatprep.subr.mxu0 0.0
        %511 = vmatpush1.msra.mxu0 %v500
        %512 = vmatprep.subr.mxu0 0.0
        %513 = vmatpush1.msra.mxu0 %v499
        %514 = vmatprep.subr.mxu0 0.0
        %515 = vmatpush1.msra.mxu0 %v498
        %516 = vmatprep.subr.mxu0 0.0
        %517 = vmatpush1.msra.mxu0 %v497
        %518 = vmatprep.subr.mxu0 0.0
        %519 = vmatpush1.msra.mxu0 %v496
        %520 = vmatprep.subr.mxu0 0.0
        %521 = vmatpush1.msra.mxu0 %v495
        %522 = vmatprep.subr.mxu0 0.0
        %523 = vmatpush1.msra.mxu0 %v494
        %524 = vmatprep.subr.mxu0 0.0
        %525 = vmatpush1.msra.mxu0 %v493
        %526 = vmatprep.subr.mxu0 0.0
        %527 = vmatpush1.msra.mxu0 %v492
        %528 = vmatprep.subr.mxu0 0.0
        %529 = vmatpush1.msra.mxu0 %v491
        %530 = vmatprep.subr.mxu0 0.0
        %531 = vmatpush1.msra.mxu0 %v490
        %532 = vmatprep.subr.mxu0 0.0
        %533 = vmatpush1.msra.mxu0 %v489
        %534 = vmatprep.subr.mxu0 0.0
        %535 = vmatpush1.msra.mxu0 %v488
        %536 = vmatprep.subr.mxu0 0.0
        %537 = vmatpush2.msra.mxu0 0.0
        %538 = vmatprep.subr.mxu0 0.0
        %539 = vmatpush2.msra.mxu0 0.0
        %540 = vmatprep.subr.mxu0 0.0
        %541 = vmatpush2.msra.mxu0 0.0
        %542 = vmatprep.subr.mxu0 0.0
        %543 = vmatpush2.msra.mxu0 0.0
        %544 = vmatprep.subr.mxu0 0.0
        %545 = vmatpush2.msra.mxu0 0.0
        %546 = vmatprep.subr.mxu0 0.0
        %547 = vmatpush2.msra.mxu0 0.0
        %548 = vmatprep.subr.mxu0 0.0
        %549 = vmatpush2.msra.mxu0 0.0
        %550 = vmatprep.subr.mxu0 0.0
        %551 = vmatpush2.msra.mxu0 0.0
        %552 = vmatprep.subr.mxu0 0.0
        %553 = vmatpush2.msra.mxu0 0.0
        %554 = vmatprep.subr.mxu0 0.0
        %555 = vmatpush2.msra.mxu0 0.0
        %556 = vmatprep.subr.mxu0 0.0
        %557 = vmatpush2.msra.mxu0 0.0
        %558 = vmatprep.subr.mxu0 0.0
        %559 = vmatpush2.msra.mxu0 0.0
        %560 = vmatprep.subr.mxu0 0.0
        %561 = vmatpush2.msra.mxu0 0.0
        %562 = vmatprep.subr.mxu0 0.0
        %563 = vmatpush2.msra.mxu0 0.0
        %564 = vmatprep.subr.mxu0 0.0
        %565 = vmatpush2.msra.mxu0 0.0
        %566 = vmatprep.subr.mxu0 0.0
        %567 = vmatpush2.msra.mxu0 0.0
        %568 = vmatprep.mubr.f32.mxu0 0.0
        %569 = vmatmul.mubr.f32.gmra.mxu0 %v487
        %v570 = vpop.f32.mrf.mxu0
        %v571 = vadd.f32 0.0, %v570
        %v572 = vpop.f32.mrf.mxu0
        %573 = vdwg.mxu0
        %574 = vst [vmem:[%s307] sm:$0xff] %v571
        %s575 = sand.u32 %s161, 1
        %s576 = scalar_lea.sflag [#allocation4], %s575
        %s577 = sand.u32 %s161, 1
        %s578 = smul.addr %s577, 8
        %s579 = scalar_lea.vmem [#allocation10], %s578
        // Predicated region
        $region57: #{tpu_custom_call.1} parent=39 // pred_check
          %p580 = pneg %p171
        $region58: #{tpu_custom_call.1} parent=39 // pred_check_branch
          %582 = sbr.rel (%p580) target = $region60
        $region59: #{tpu_custom_call.1} parent=39 // pred_region
          %s584 = ssub.s32 128, 128
          %585 = vsyncadd %s576, %s584
          %s586 = smul.addr %s28, 128
          %s587 = scalar_lea.hbm %s5, %s586
          %s589 = sshll.u32 %s579, 4
          %s590 = int_to_ptr.vmem [resolvable:$true] %s589
          %592 = dma.vmem_to_hbm [thread:$0]  %s590, 128, %s587, %s576
        $region60: #{tpu_custom_call.1} parent=39 // pred_fallthru
          _
      $region40: #{tpu_custom_call.1} parent=5 // pred_fallthru
        _
      %p593 = scmp.le.s32.totalorder 2, %s19
      // Predicated region
      $region61: #{tpu_custom_call.1} parent=5 // pred_check
        %p594 = pneg %p593
      $region62: #{tpu_custom_call.1} parent=5 // pred_check_branch
        %596 = sbr.rel (%p594) target = $region64
      $region63: #{tpu_custom_call.1} parent=5 // pred_region
        %s597 = ssub.s32 %s19, 2
        // Predicated region
        $region65: #{tpu_custom_call.1} parent=63 // pred_check
          %p598 = pneg %p177
        $region66: #{tpu_custom_call.1} parent=63 // pred_check_branch
          %600 = sbr.rel (%p598) target = $region68
        $region67: #{tpu_custom_call.1} parent=63 // pred_region
          %s601 = sand.u32 %s162, 1
          %s602 = scalar_lea.sflag [#allocation4], %s601
          %s603 = sand.u32 %s162, 1
          %s604 = smul.addr %s603, 8
          %s605 = scalar_lea.vmem [#allocation10], %s604
          %606 = dma.done %s602, 128
        $region68: #{tpu_custom_call.1} parent=63 // pred_fallthru
          _
      $region64: #{tpu_custom_call.1} parent=5 // pred_fallthru
        _
    $region6: #{tpu_custom_call.1} parent=1 // loop_footer
      %s23 = sadd.s32 1, %s19
    $region7: #{tpu_custom_call.1} parent=1 // loop_footer_branch
      %18 = sbr.rel target = $region3
    $region8: #{tpu_custom_call.1} parent=1 // loop_exit
      _
    %607 = vsyncpa [#allocation3], 1
    %s608 = scalar_lea.sflag [#allocation3], 1
    %609 = vsyncpa %s608, 1
    %610 = vsyncpa [#allocation6], 1
    %611 = vsyncpa [#allocation9], 1
    %612 = vsyncpa [#allocation4], 1
    %s613 = scalar_lea.sflag [#allocation4], 1
    %614 = vsyncpa %s613, 1

// kernel: tpu_custom_call.1
$region0: #{tpu_custom_call.1}
  #allocation0 [shape = 'u32[]', space=smem, size = 0x4, offset = 0x4, fixed_abs, tag = 'smem constant byte address 0x4 - core index']
  #allocation1 [shape = 'u32[144,128]{1,0:T(1,128)}', space=vmem, size = 0x12000, scoped, tag = 'internal scratch']
  %s0 = inlined_call_operand.hbm [shape: bf16[16,32], index: 0, kind: input, shape index: {}]
  %s1 = inlined_call_operand.hbm [shape: bf16[32,256], index: 1, kind: input, shape index: {}]
  %s2 = inlined_call_operand.vmem [shape: f32[1,256], index: 2, kind: input, shape index: {}]
  %s3 = inlined_call_operand.hbm [shape: f32[128,128], index: 3, kind: input, shape index: {}]
  %s4 = inlined_call_operand.hbm [shape: f32[128,128], index: 4, kind: input, shape index: {}]
  %s5 = inlined_call_operand.hbm [shape: f32[16,128], index: 5, kind: output, shape index: {}]
  %s6 = sld [smem:[#allocation0]]
  $region69: #{tpu_custom_call.1} parent=0
    _
  %s8 = ssub.s32 1, %s6
  %s9 = scalar_select 0, %s8, %s6
  $region1: #{tpu_custom_call.1} parent=0
    #allocation2 [shape = 'u8[4096]{0}', space=vmem, size = 0x1000, scoped, tag = 'input window, operand 0']
    #allocation3 [shape = 's32[2]{0}', space=sflag, size = 0x8, scoped, tag = 'scoped memory for tpu_custom_call.1']
    #allocation4 [shape = 's32[2]{0}', space=sflag, size = 0x8, scoped, tag = 'scoped memory for tpu_custom_call.1']
    #allocation5 [shape = 'u8[16384]{0}', space=vmem, size = 0x4000, scoped, tag = 'input window, operand 1, single buffered']
    #allocation6 [shape = 's32[1]{0}', space=sflag, size = 0x4, scoped, tag = 'scoped memory for tpu_custom_call.1']
    #allocation7 [shape = 'u8[65536]{0}', space=vmem, size = 0x10000, scoped, tag = 'input window, operand 3, single buffered']
    #allocation8 [shape = 'u8[65536]{0}', space=vmem, size = 0x10000, scoped, tag = 'input window, operand 4, single buffered']
    #allocation9 [shape = 's32[1]{0}', space=sflag, size = 0x4, scoped, tag = 'scoped memory for tpu_custom_call.1']
    #allocation10 [shape = 'u8[8192]{0}', space=vmem, size = 0x2000, scoped, tag = 'output window, operand 0']
    %10 = vsyncpa [#allocation3], 0
    %s11 = scalar_lea.sflag [#allocation3], 1
    %12 = vsyncpa %s11, 0
    %13 = vsyncpa [#allocation6], 0
    %14 = vsyncpa [#allocation9], 0
    %15 = vsyncpa [#allocation4], 0
    %s16 = scalar_lea.sflag [#allocation4], 1
    %17 = vsyncpa %s16, 0
    loop: start=0, step=1, limit=4
    $region2: #{tpu_custom_call.1} parent=1 // loop_pre_header
      _
    $region3: #{tpu_custom_call.1} parent=1 // loop_header
      %s19 = sphi 0, %s23
      %p20 = scmp.ge.s32.totalorder %s19, 4
      %s26 = sphi 0, %s38
      %s27 = sphi 0, %s34
      %s28 = sphi 0, %s26
      %s29 = sphi 0, %s27
      %s30 = sphi 0, %s28
      %s31 = sphi 0, %s29
      %s43 = sphi 0, %s45
      %s46 = sphi 0, %s43
      %s47 = sphi 0, %s46
      %s63 = sphi 0, %s47
      %s69 = sphi 0, %s71
      %s72 = sphi 0, %s69
      %s73 = sphi 0, %s72
      %s89 = sphi 0, %s73
      %s93 = sphi 0, %s93
      %s95 = sphi 0, %s93
      %s96 = sphi 0, %s95
      %s110 = sphi 0, %s96
      %s114 = sphi 0, %s114
      %s116 = sphi 0, %s114
      %s117 = sphi 0, %s116
      %s131 = sphi 0, %s117
      %s135 = sphi 0, %s135
      %s137 = sphi 0, %s135
      %s138 = sphi 0, %s137
      %s152 = sphi 0, %s138
      %s158 = sphi 0, %s160
      %s161 = sphi 0, %s158
      %s162 = sphi 0, %s161
      %s178 = sphi 0, %s162
    $region4: #{tpu_custom_call.1} parent=1 // loop_header_branch
      %22 = sbr.rel (%p20) target = $region8
    $region5: #{tpu_custom_call.1} parent=1 // loop_body
      %s24 = ssub.s32 %s19, 1
      %s25 = ssub.s32 %s19, 2
      %s32 = sadd.s32 1, %s27
      %p33 = scmp.ge.s32.totalorder %s32, 1
      %s34 = scalar_select %p33, 0, %s32
      %s35 = sadd.s32 1, %s26
      %s36 = scalar_select %p33, %s35, %s26
      %p37 = scmp.ge.s32.totalorder %s36, 2
      %s38 = scalar_select %p37, 0, %s36
      %s39 = ssub.s32 %s26, %s38
      %s40 = ssub.s32 %s27, %s34
      %s41 = sor.u32 %s39, %s40
      %p42 = scmp.eq.s32.totalorder %s41, 0
      %s44 = sadd.s32 %s43, 1
      %s45 = scalar_select %p42, %s43, %s44
      %p48 = pneg %p42
      %p49 = scmp.eq.s32.totalorder %s19, 1
      %p50 = por %p48, %p49
      %p51 = scmp.ne.s32.totalorder %s43, %s46
      %p52 = scmp.eq.s32.totalorder %s19, 0
      %p53 = por %p51, %p52
      %p54 = scmp.ne.s32.totalorder %s43, %s46
      %p55 = scmp.eq.s32.totalorder %s24, 1
      %p56 = por %p54, %p55
      %p57 = scmp.ne.s32.totalorder %s46, %s47
      %p58 = scmp.eq.s32.totalorder %s24, 0
      %p59 = por %p57, %p58
      %p60 = scmp.ne.s32.totalorder %s46, %s47
      %p61 = scmp.eq.s32.totalorder %s25, 1
      %p62 = por %p60, %p61
      %p64 = scmp.ne.s32.totalorder %s47, %s63
      %p65 = scmp.eq.s32.totalorder %s25, 0
      %p66 = por %p64, %p65
      %s67 = ssub.s32 %s27, %s34
      %p68 = scmp.eq.s32.totalorder %s67, 0
      %s70 = sadd.s32 %s69, 1
      %s71 = scalar_select %p68, %s69, %s70
      %p74 = pneg %p68
      %p75 = scmp.eq.s32.totalorder %s19, 1
      %p76 = por %p74, %p75
      %p77 = scmp.ne.s32.totalorder %s69, %s72
      %p78 = scmp.eq.s32.totalorder %s19, 0
      %p79 = por %p77, %p78
      %p80 = scmp.ne.s32.totalorder %s69, %s72
      %p81 = scmp.eq.s32.totalorder %s24, 1
      %p82 = por %p80, %p81
      %p83 = scmp.ne.s32.totalorder %s72, %s73
      %p84 = scmp.eq.s32.totalorder %s24, 0
      %p85 = por %p83, %p84
      %p86 = scmp.ne.s32.totalorder %s72, %s73
      %p87 = scmp.eq.s32.totalorder %s25, 1
      %p88 = por %p86, %p87
      %p90 = scmp.ne.s32.totalorder %s73, %s89
      %p91 = scmp.eq.s32.totalorder %s25, 0
      %p92 = por %p90, %p91
      %s94 = sadd.s32 %s93, 1
      %p97 = scmp.eq.s32.totalorder %s19, 1
      %p98 = scmp.ne.s32.totalorder %s93, %s95
      %p99 = scmp.eq.s32.totalorder %s19, 0
      %p100 = por %p98, %p99
      %p101 = scmp.ne.s32.totalorder %s93, %s95
      %p102 = scmp.eq.s32.totalorder %s24, 1
      %p103 = por %p101, %p102
      %p104 = scmp.ne.s32.totalorder %s95, %s96
      %p105 = scmp.eq.s32.totalorder %s24, 0
      %p106 = por %p104, %p105
      %p107 = scmp.ne.s32.totalorder %s95, %s96
      %p108 = scmp.eq.s32.totalorder %s25, 1
      %p109 = por %p107, %p108
      %p111 = scmp.ne.s32.totalorder %s96, %s110
      %p112 = scmp.eq.s32.totalorder %s25, 0
      %p113 = por %p111, %p112
      %s115 = sadd.s32 %s114, 1
      %p118 = scmp.eq.s32.totalorder %s19, 1
      %p119 = scmp.ne.s32.totalorder %s114, %s116
      %p120 = scmp.eq.s32.totalorder %s19, 0
      %p121 = por %p119, %p120
      %p122 = scmp.ne.s32.totalorder %s114, %s116
      %p123 = scmp.eq.s32.totalorder %s24, 1
      %p124 = por %p122, %p123
      %p125 = scmp.ne.s32.totalorder %s116, %s117
      %p126 = scmp.eq.s32.totalorder %s24, 0
      %p127 = por %p125, %p126
      %p128 = scmp.ne.s32.totalorder %s116, %s117
      %p129 = scmp.eq.s32.totalorder %s25, 1
      %p130 = por %p128, %p129
      %p132 = scmp.ne.s32.totalorder %s117, %s131
      %p133 = scmp.eq.s32.totalorder %s25, 0
      %p134 = por %p132, %p133
      %s136 = sadd.s32 %s135, 1
      %p139 = scmp.eq.s32.totalorder %s19, 1
      %p140 = scmp.ne.s32.totalorder %s135, %s137
      %p141 = scmp.eq.s32.totalorder %s19, 0
      %p142 = por %p140, %p141
      %p143 = scmp.ne.s32.totalorder %s135, %s137
      %p144 = scmp.eq.s32.totalorder %s24, 1
      %p145 = por %p143, %p144
      %p146 = scmp.ne.s32.totalorder %s137, %s138
      %p147 = scmp.eq.s32.totalorder %s24, 0
      %p148 = por %p146, %p147
      %p149 = scmp.ne.s32.totalorder %s137, %s138
      %p150 = scmp.eq.s32.totalorder %s25, 1
      %p151 = por %p149, %p150
      %p153 = scmp.ne.s32.totalorder %s138, %s152
      %p154 = scmp.eq.s32.totalorder %s25, 0
      %p155 = por %p153, %p154
      %s156 = ssub.s32 %s26, %s38
      %p157 = scmp.eq.s32.totalorder %s156, 0
      %s159 = sadd.s32 %s158, 1
      %s160 = scalar_select %p157, %s158, %s159
      %p163 = pneg %p157
      %p164 = scmp.eq.s32.totalorder %s19, 1
      %p165 = por %p163, %p164
      %p166 = scmp.ne.s32.totalorder %s158, %s161
      %p167 = scmp.eq.s32.totalorder %s19, 0
      %p168 = por %p166, %p167
      %p169 = scmp.ne.s32.totalorder %s158, %s161
      %p170 = scmp.eq.s32.totalorder %s24, 1
      %p171 = por %p169, %p170
      %p172 = scmp.ne.s32.totalorder %s161, %s162
      %p173 = scmp.eq.s32.totalorder %s24, 0
      %p174 = por %p172, %p173
      %p175 = scmp.ne.s32.totalorder %s161, %s162
      %p176 = scmp.eq.s32.totalorder %s25, 1
      %p177 = por %p175, %p176
      %p179 = scmp.ne.s32.totalorder %s162, %s178
      %p180 = scmp.eq.s32.totalorder %s25, 0
      %p181 = por %p179, %p180
      %p182 = scmp.le.s32.totalorder 1, %s19
      %p183 = scmp.lt.s32.totalorder %s19, 3
      %p184 = pnand %p182, %p183
      %p185 = pneg %p184
      // Predicated region
      $region9: #{tpu_custom_call.1} parent=5 // pred_check
        _
      $region10: #{tpu_custom_call.1} parent=5 // pred_check_branch
        %187 = sbr.rel (%p184) target = $region12
      $region11: #{tpu_custom_call.1} parent=5 // pred_region
        %s188 = ssub.s32 %s19, 1
        // Predicated region
        $region13: #{tpu_custom_call.1} parent=11 // pred_check
          %p189 = pneg %p85
        $region14: #{tpu_custom_call.1} parent=11 // pred_check_branch
          %191 = sbr.rel (%p189) target = $region16
        $region15: #{tpu_custom_call.1} parent=11 // pred_region
          %s192 = smul.u32 4, %s29
          %s194 = ssub.s32 512, 512
          %195 = vsyncadd [#allocation6], %s194
          %s196 = smul.addr %s192, 2
          %s197 = smul.addr %s196, 64
          %s198 = scalar_lea.hbm %s1, %s197
          %s199 = sshll.u32 [#allocation5], 4
          %s200 = int_to_ptr.vmem [resolvable:$true] %s199
          %205 = dma.hbm_to_vmem [thread:$0]  %s198, 512, %s200, [#allocation6], 128, 128, 8
        $region16: #{tpu_custom_call.1} parent=11 // pred_fallthru
          _
        // Predicated region
        $region17: #{tpu_custom_call.1} parent=11 // pred_check
          %p206 = pneg %p106
        $region18: #{tpu_custom_call.1} parent=11 // pred_check_branch
          %208 = sbr.rel (%p206) target = $region20
        $region19: #{tpu_custom_call.1} parent=11 // pred_region
          _
        $region20: #{tpu_custom_call.1} parent=11 // pred_fallthru
          _
        // Predicated region
        $region21: #{tpu_custom_call.1} parent=11 // pred_check
          %p209 = pneg %p127
        $region22: #{tpu_custom_call.1} parent=11 // pred_check_branch
          %211 = sbr.rel (%p209) target = $region24
        $region23: #{tpu_custom_call.1} parent=11 // pred_region
          %s213 = ssub.s32 2048, 2048
          %214 = vsyncadd [#allocation6], %s213
          %s215 = sshll.u32 [#allocation7], 4
          %s216 = int_to_ptr.vmem [resolvable:$true] %s215
          %221 = dma.hbm_to_vmem [thread:$0]  %s3, 2048, %s216, [#allocation6], 128, 128, 8
        $region24: #{tpu_custom_call.1} parent=11 // pred_fallthru
          _
        // Predicated region
        $region25: #{tpu_custom_call.1} parent=11 // pred_check
          %p222 = pneg %p148
        $region26: #{tpu_custom_call.1} parent=11 // pred_check_branch
          %224 = sbr.rel (%p222) target = $region28
        $region27: #{tpu_custom_call.1} parent=11 // pred_region
          %s226 = ssub.s32 2048, 2048
          %227 = vsyncadd [#allocation9], %s226
          %s228 = sshll.u32 [#allocation8], 4
          %s229 = int_to_ptr.vmem [resolvable:$true] %s228
          %234 = dma.hbm_to_vmem [thread:$0]  %s4, 2048, %s229, [#allocation9], 128, 128, 8
        $region28: #{tpu_custom_call.1} parent=11 // pred_fallthru
          _
      $region12: #{tpu_custom_call.1} parent=5 // pred_fallthru
        _
      %p235 = scmp.lt.s32.totalorder %s19, 2
      // Predicated region
      $region29: #{tpu_custom_call.1} parent=5 // pred_check
        %p236 = pneg %p235
      $region30: #{tpu_custom_call.1} parent=5 // pred_check_branch
        %238 = sbr.rel (%p236) target = $region32
      $region31: #{tpu_custom_call.1} parent=5 // pred_region
        // Predicated region
        $region33: #{tpu_custom_call.1} parent=31 // pred_check
          %p239 = pneg %p53
        $region34: #{tpu_custom_call.1} parent=31 // pred_check_branch
          %241 = sbr.rel (%p239) target = $region36
        $region35: #{tpu_custom_call.1} parent=31 // pred_region
          %s242 = sand.u32 %s43, 1
          %s243 = scalar_lea.sflag [#allocation3], %s242
          %s244 = sand.u32 %s43, 1
          %s245 = smul.addr %s244, 4
          %s246 = scalar_lea.vmem [#allocation2], %s245
          %s248 = ssub.s32 64, 64
          %249 = vsyncadd %s243, %s248
          %s250 = sadd.s32 %s27, %s26
          %s251 = smul.addr %s250, 64
          %s252 = scalar_lea.hbm %s0, %s251
          %s254 = sshll.u32 %s246, 4
          %s255 = int_to_ptr.vmem [resolvable:$true] %s254
          %257 = dma.hbm_to_vmem [thread:$0]  %s252, 64, %s255, %s243
        $region36: #{tpu_custom_call.1} parent=31 // pred_fallthru
          _
      $region32: #{tpu_custom_call.1} parent=5 // pred_fallthru
        _
      %p258 = scmp.le.s32.totalorder 1, %s19
      %p259 = scmp.lt.s32.totalorder %s19, 3
      %p260 = pnand %p258, %p259
      %p261 = pneg %p260
      // Predicated region
      $region37: #{tpu_custom_call.1} parent=5 // pred_check
        _
      $region38: #{tpu_custom_call.1} parent=5 // pred_check_branch
        %263 = sbr.rel (%p260) target = $region40
      $region39: #{tpu_custom_call.1} parent=5 // pred_region
        %s264 = ssub.s32 %s19, 1
        %s265 = sand.u32 %s46, 1
        %s266 = scalar_lea.sflag [#allocation3], %s265
        %s267 = sand.u32 %s46, 1
        %s268 = smul.addr %s267, 4
        %s269 = scalar_lea.vmem [#allocation2], %s268
        // Predicated region
        $region41: #{tpu_custom_call.1} parent=39 // pred_check
          %p270 = pneg %p59
        $region42: #{tpu_custom_call.1} parent=39 // pred_check_branch
          %272 = sbr.rel (%p270) target = $region44
        $region43: #{tpu_custom_call.1} parent=39 // pred_region
          %273 = dma.done %s266, 64
        $region44: #{tpu_custom_call.1} parent=39 // pred_fallthru
          _
        // Predicated region
        $region45: #{tpu_custom_call.1} parent=39 // pred_check
          %p274 = pneg %p85
        $region46: #{tpu_custom_call.1} parent=39 // pred_check_branch
          %276 = sbr.rel (%p274) target = $region48
        $region47: #{tpu_custom_call.1} parent=39 // pred_region
          %277 = dma.done [#allocation6], 512
        $region48: #{tpu_custom_call.1} parent=39 // pred_fallthru
          _
        // Predicated region
        $region49: #{tpu_custom_call.1} parent=39 // pred_check
          %p278 = pneg %p127
        $region50: #{tpu_custom_call.1} parent=39 // pred_check_branch
          %280 = sbr.rel (%p278) target = $region52
        $region51: #{tpu_custom_call.1} parent=39 // pred_region
          %281 = dma.done [#allocation6], 2048
        $region52: #{tpu_custom_call.1} parent=39 // pred_fallthru
          _
        // Predicated region
        $region53: #{tpu_custom_call.1} parent=39 // pred_check
          %p282 = pneg %p148
        $region54: #{tpu_custom_call.1} parent=39 // pred_check_branch
          %284 = sbr.rel (%p282) target = $region56
        $region55: #{tpu_custom_call.1} parent=39 // pred_region
          %285 = dma.done [#allocation9], 2048
        $region56: #{tpu_custom_call.1} parent=39 // pred_fallthru
          _
        %s286 = sand.u32 %s46, 1
        %s287 = scalar_lea.sflag [#allocation3], %s286
        %s288 = sand.u32 %s46, 1
        %s289 = smul.addr %s288, 4
        %s290 = scalar_lea.vmem [#allocation2], %s289
        %p291 = pneg %p59
        %p292 = pneg %p56
        %p293 = pneg %p85
        %p294 = pneg %p82
        %p295 = pneg %p106
        %p296 = pneg %p103
        %p297 = pneg %p127
        %p298 = pneg %p124
        %p299 = pneg %p148
        %p300 = pneg %p145
        %p301 = pneg %p174
        %p302 = pneg %p171
        %s303 = sand.u32 %s161, 1
        %s304 = scalar_lea.sflag [#allocation4], %s303
        %s305 = sand.u32 %s161, 1
        %s306 = smul.addr %s305, 8
        %s307 = scalar_lea.vmem [#allocation10], %s306
        %s308 = smul.u32 4, %s29
        %v310 = vld [vmem:[%s269] sm:$0xf]
        %v311 = vld [vmem:[#allocation5] sm:$0xff]
        %v312 = vld [vmem:[#allocation5 + $0x8] sm:$0xff]
        %v313 = vld [vmem:[#allocation5 + $0x10] sm:$0xff]
        %v314 = vld [vmem:[#allocation5 + $0x18] sm:$0xff]
        %v315 = vld [vmem:[%s2] sm:$0x3]
        %v317 = vlaneseq
        %v318 = vshrl.u32 %v317, 7
        %v319 = vsub.s32 0, %v318
        %v320 = vrot.slane %v315, %v319
        %v321 = vlaneseq
        %v322 = vshrl.u32 %v321, 7
        %v323 = vsub.s32 1, %v322
        %v324 = vrot.slane %v315, %v323
        %v331 = vunpack.c.l.b16 %v311
        %v332 = vunpack.c.h.b16 %v311
        %v333 = vunpack.c.l.b16 %v312
        %v334 = vunpack.c.h.b16 %v312
        %v335 = vunpack.c.l.b16 %v313
        %v336 = vunpack.c.h.b16 %v313
        %v337 = vunpack.c.l.b16 %v314
        %v338 = vunpack.c.h.b16 %v314
        %v339 = vpack.c.b16 %v333, %v331
        %v340 = vpack.c.b16 %v334, %v332
        %v341 = vpack.c.b16 %v337, %v335
        %v342 = vpack.c.b16 %v338, %v336
        %vm347 = vcmask 261120
        %v349 = vsel %vm347, %v310, 0
        %351 = vmatprep.subr.bf16.mxu0 0
        %352 = vmatpush1.bf16.msra.mxu0 0
        %353 = vmatprep.subr.bf16.mxu0 0
        %354 = vmatpush1.bf16.msra.mxu0 0
        %355 = vmatprep.subr.bf16.mxu0 0
        %356 = vmatpush1.bf16.msra.mxu0 0
        %357 = vmatprep.subr.bf16.mxu0 0
        %358 = vmatpush1.bf16.msra.mxu0 0
        %359 = vmatprep.subr.bf16.mxu0 0
        %360 = vmatpush1.bf16.msra.mxu0 0
        %361 = vmatprep.subr.bf16.mxu0 0
        %362 = vmatpush1.bf16.msra.mxu0 0
        %363 = vmatprep.subr.bf16.mxu0 %v342
        %364 = vmatpush1.bf16.msra.mxu0 %v341
        %365 = vmatprep.subr.bf16.mxu0 %v340
        %366 = vmatpush1.bf16.msra.mxu0 %v339
        %367 = vmatprep.subr.bf16.mxu0 0
        %368 = vmatpush2.bf16.msra.mxu0 0
        %369 = vmatprep.subr.bf16.mxu0 0
        %370 = vmatpush2.bf16.msra.mxu0 0
        %371 = vmatprep.subr.bf16.mxu0 0
        %372 = vmatpush2.bf16.msra.mxu0 0
        %373 = vmatprep.subr.bf16.mxu0 0
        %374 = vmatpush2.bf16.msra.mxu0 0
        %375 = vmatprep.subr.bf16.mxu0 0
        %376 = vmatpush2.bf16.msra.mxu0 0
        %377 = vmatprep.subr.bf16.mxu0 0
        %378 = vmatpush2.bf16.msra.mxu0 0
        %379 = vmatprep.subr.bf16.mxu0 0
        %380 = vmatpush2.bf16.msra.mxu0 0
        %381 = vmatprep.subr.bf16.mxu0 0
        %382 = vmatpush2.bf16.msra.mxu0 0
        %383 = vmatprep.mubr.bf16.mxu0 0
        %384 = vmatmul.mubr.bf16.gmra.mxu0 %v349
        %v385 = vpop.f32.mrf.mxu0
        %v386 = vadd.f32 %v320, %v385
        %v387 = vpop.f32.mrf.mxu0
        %v388 = vadd.f32 %v324, %v387
        %v389 = vpop.f32.mrf.mxu0
        %v390 = vpop.f32.mrf.mxu0
        %391 = vdwg.mxu0
        %392 = vmax.xlane.f32.xlu0 %v388
        %v393 = vpop.xlane.xlu0 %392
        %v394 = vsub.f32 %v388, %v393
        %v395 = vmul.f32 %v394, 1.442695
        %v396 = vpow.pop %v395
        %397 = vadd.xlane.f32.xlu0 %v396
        %v398 = vpop.xlane.xlu0 %397
        %v399 = vrcp.pop %v398
        %v400 = vmul.f32 %v396, %v399
        %v401 = vld [vmem:[#allocation7] sm:$0xff]
        %v402 = vld [vmem:[#allocation7 + $0x8] sm:$0xff]
        %v403 = vld [vmem:[#allocation7 + $0x10] sm:$0xff]
        %v404 = vld [vmem:[#allocation7 + $0x18] sm:$0xff]
        %v405 = vld [vmem:[#allocation7 + $0x20] sm:$0xff]
        %v406 = vld [vmem:[#allocation7 + $0x28] sm:$0xff]
        %v407 = vld [vmem:[#allocation7 + $0x30] sm:$0xff]
        %v408 = vld [vmem:[#allocation7 + $0x38] sm:$0xff]
        %v409 = vld [vmem:[#allocation7 + $0x40] sm:$0xff]
        %v410 = vld [vmem:[#allocation7 + $0x48] sm:$0xff]
        %v411 = vld [vmem:[#allocation7 + $0x50] sm:$0xff]
        %v412 = vld [vmem:[#allocation7 + $0x58] sm:$0xff]
        %v413 = vld [vmem:[#allocation7 + $0x60] sm:$0xff]
        %v414 = vld [vmem:[#allocation7 + $0x68] sm:$0xff]
        %v415 = vld [vmem:[#allocation7 + $0x70] sm:$0xff]
        %v416 = vld [vmem:[#allocation7 + $0x78] sm:$0xff]
        %417 = vmatprep.subr.mxu0 0.0
        %418 = vmatpush1.msra.mxu0 %v416
        %419 = vmatprep.subr.mxu0 0.0
        %420 = vmatpush1.msra.mxu0 %v415
        %421 = vmatprep.subr.mxu0 0.0
        %422 = vmatpush1.msra.mxu0 %v414
        %423 = vmatprep.subr.mxu0 0.0
        %424 = vmatpush1.msra.mxu0 %v413
        %425 = vmatprep.subr.mxu0 0.0
        %426 = vmatpush1.msra.mxu0 %v412
        %427 = vmatprep.subr.mxu0 0.0
        %428 = vmatpush1.msra.mxu0 %v411
        %429 = vmatprep.subr.mxu0 0.0
        %430 = vmatpush1.msra.mxu0 %v410
        %431 = vmatprep.subr.mxu0 0.0
        %432 = vmatpush1.msra.mxu0 %v409
        %433 = vmatprep.subr.mxu0 0.0
        %434 = vmatpush1.msra.mxu0 %v408
        %435 = vmatprep.subr.mxu0 0.0
        %436 = vmatpush1.msra.mxu0 %v407
        %437 = vmatprep.subr.mxu0 0.0
        %438 = vmatpush1.msra.mxu0 %v406
        %439 = vmatprep.subr.mxu0 0.0
        %440 = vmatpush1.msra.mxu0 %v405
        %441 = vmatprep.subr.mxu0 0.0
        %442 = vmatpush1.msra.mxu0 %v404
        %443 = vmatprep.subr.mxu0 0.0
        %444 = vmatpush1.msra.mxu0 %v403
        %445 = vmatprep.subr.mxu0 0.0
        %446 = vmatpush1.msra.mxu0 %v402
        %447 = vmatprep.subr.mxu0 0.0
        %448 = vmatpush1.msra.mxu0 %v401
        %449 = vmatprep.subr.mxu0 0.0
        %450 = vmatpush2.msra.mxu0 0.0
        %451 = vmatprep.subr.mxu0 0.0
        %452 = vmatpush2.msra.mxu0 0.0
        %453 = vmatprep.subr.mxu0 0.0
        %454 = vmatpush2.msra.mxu0 0.0
        %455 = vmatprep.subr.mxu0 0.0
        %456 = vmatpush2.msra.mxu0 0.0
        %457 = vmatprep.subr.mxu0 0.0
        %458 = vmatpush2.msra.mxu0 0.0
        %459 = vmatprep.subr.mxu0 0.0
        %460 = vmatpush2.msra.mxu0 0.0
        %461 = vmatprep.subr.mxu0 0.0
        %462 = vmatpush2.msra.mxu0 0.0
        %463 = vmatprep.subr.mxu0 0.0
        %464 = vmatpush2.msra.mxu0 0.0
        %465 = vmatprep.subr.mxu0 0.0
        %466 = vmatpush2.msra.mxu0 0.0
        %467 = vmatprep.subr.mxu0 0.0
        %468 = vmatpush2.msra.mxu0 0.0
        %469 = vmatprep.subr.mxu0 0.0
        %470 = vmatpush2.msra.mxu0 0.0
        %471 = vmatprep.subr.mxu0 0.0
        %472 = vmatpush2.msra.mxu0 0.0
        %473 = vmatprep.subr.mxu0 0.0
        %474 = vmatpush2.msra.mxu0 0.0
        %475 = vmatprep.subr.mxu0 0.0
        %476 = vmatpush2.msra.mxu0 0.0
        %477 = vmatprep.subr.mxu0 0.0
        %478 = vmatpush2.msra.mxu0 0.0
        %479 = vmatprep.subr.mxu0 0.0
        %480 = vmatpush2.msra.mxu0 0.0
        %481 = vmatprep.mubr.f32.mxu0 0.0
        %482 = vmatmul.mubr.f32.gmra.mxu0 %v400
        %v483 = vpop.f32.mrf.mxu0
        %v484 = vadd.f32 0.0, %v483
        %v485 = vpop.f32.mrf.mxu0
        %486 = vdwg.mxu0
        %v487 = vmul.f32 %v484, %v386
        %v488 = vld [vmem:[#allocation8] sm:$0xff]
        %v489 = vld [vmem:[#allocation8 + $0x8] sm:$0xff]
        %v490 = vld [vmem:[#allocation8 + $0x10] sm:$0xff]
        %v491 = vld [vmem:[#allocation8 + $0x18] sm:$0xff]
        %v492 = vld [vmem:[#allocation8 + $0x20] sm:$0xff]
        %v493 = vld [vmem:[#allocation8 + $0x28] sm:$0xff]
        %v494 = vld [vmem:[#allocation8 + $0x30] sm:$0xff]
        %v495 = vld [vmem:[#allocation8 + $0x38] sm:$0xff]
        %v496 = vld [vmem:[#allocation8 + $0x40] sm:$0xff]
        %v497 = vld [vmem:[#allocation8 + $0x48] sm:$0xff]
        %v498 = vld [vmem:[#allocation8 + $0x50] sm:$0xff]
        %v499 = vld [vmem:[#allocation8 + $0x58] sm:$0xff]
        %v500 = vld [vmem:[#allocation8 + $0x60] sm:$0xff]
        %v501 = vld [vmem:[#allocation8 + $0x68] sm:$0xff]
        %v502 = vld [vmem:[#allocation8 + $0x70] sm:$0xff]
        %v503 = vld [vmem:[#allocation8 + $0x78] sm:$0xff]
        %504 = vmatprep.subr.mxu0 0.0
        %505 = vmatpush1.msra.mxu0 %v503
        %506 = vmatprep.subr.mxu0 0.0
        %507 = vmatpush1.msra.mxu0 %v502
        %508 = vmatprep.subr.mxu0 0.0
        %509 = vmatpush1.msra.mxu0 %v501
        %510 = vmatprep.subr.mxu0 0.0
        %511 = vmatpush1.msra.mxu0 %v500
        %512 = vmatprep.subr.mxu0 0.0
        %513 = vmatpush1.msra.mxu0 %v499
        %514 = vmatprep.subr.mxu0 0.0
        %515 = vmatpush1.msra.mxu0 %v498
        %516 = vmatprep.subr.mxu0 0.0
        %517 = vmatpush1.msra.mxu0 %v497
        %518 = vmatprep.subr.mxu0 0.0
        %519 = vmatpush1.msra.mxu0 %v496
        %520 = vmatprep.subr.mxu0 0.0
        %521 = vmatpush1.msra.mxu0 %v495
        %522 = vmatprep.subr.mxu0 0.0
        %523 = vmatpush1.msra.mxu0 %v494
        %524 = vmatprep.subr.mxu0 0.0
        %525 = vmatpush1.msra.mxu0 %v493
        %526 = vmatprep.subr.mxu0 0.0
        %527 = vmatpush1.msra.mxu0 %v492
        %528 = vmatprep.subr.mxu0 0.0
        %529 = vmatpush1.msra.mxu0 %v491
        %530 = vmatprep.subr.mxu0 0.0
        %531 = vmatpush1.msra.mxu0 %v490
        %532 = vmatprep.subr.mxu0 0.0
        %533 = vmatpush1.msra.mxu0 %v489
        %534 = vmatprep.subr.mxu0 0.0
        %535 = vmatpush1.msra.mxu0 %v488
        %536 = vmatprep.subr.mxu0 0.0
        %537 = vmatpush2.msra.mxu0 0.0
        %538 = vmatprep.subr.mxu0 0.0
        %539 = vmatpush2.msra.mxu0 0.0
        %540 = vmatprep.subr.mxu0 0.0
        %541 = vmatpush2.msra.mxu0 0.0
        %542 = vmatprep.subr.mxu0 0.0
        %543 = vmatpush2.msra.mxu0 0.0
        %544 = vmatprep.subr.mxu0 0.0
        %545 = vmatpush2.msra.mxu0 0.0
        %546 = vmatprep.subr.mxu0 0.0
        %547 = vmatpush2.msra.mxu0 0.0
        %548 = vmatprep.subr.mxu0 0.0
        %549 = vmatpush2.msra.mxu0 0.0
        %550 = vmatprep.subr.mxu0 0.0
        %551 = vmatpush2.msra.mxu0 0.0
        %552 = vmatprep.subr.mxu0 0.0
        %553 = vmatpush2.msra.mxu0 0.0
        %554 = vmatprep.subr.mxu0 0.0
        %555 = vmatpush2.msra.mxu0 0.0
        %556 = vmatprep.subr.mxu0 0.0
        %557 = vmatpush2.msra.mxu0 0.0
        %558 = vmatprep.subr.mxu0 0.0
        %559 = vmatpush2.msra.mxu0 0.0
        %560 = vmatprep.subr.mxu0 0.0
        %561 = vmatpush2.msra.mxu0 0.0
        %562 = vmatprep.subr.mxu0 0.0
        %563 = vmatpush2.msra.mxu0 0.0
        %564 = vmatprep.subr.mxu0 0.0
        %565 = vmatpush2.msra.mxu0 0.0
        %566 = vmatprep.subr.mxu0 0.0
        %567 = vmatpush2.msra.mxu0 0.0
        %568 = vmatprep.mubr.f32.mxu0 0.0
        %569 = vmatmul.mubr.f32.gmra.mxu0 %v487
        %v570 = vpop.f32.mrf.mxu0
        %v571 = vadd.f32 0.0, %v570
        %v572 = vpop.f32.mrf.mxu0
        %573 = vdwg.mxu0
        %574 = vst [vmem:[%s307] sm:$0xff] %v571
        %s575 = sand.u32 %s161, 1
        %s576 = scalar_lea.sflag [#allocation4], %s575
        %s577 = sand.u32 %s161, 1
        %s578 = smul.addr %s577, 8
        %s579 = scalar_lea.vmem [#allocation10], %s578
        // Predicated region
        $region57: #{tpu_custom_call.1} parent=39 // pred_check
          %p580 = pneg %p171
        $region58: #{tpu_custom_call.1} parent=39 // pred_check_branch
          %582 = sbr.rel (%p580) target = $region60
        $region59: #{tpu_custom_call.1} parent=39 // pred_region
          %s584 = ssub.s32 128, 128
          %585 = vsyncadd %s576, %s584
          %s586 = smul.addr %s28, 128
          %s587 = scalar_lea.hbm %s5, %s586
          %s589 = sshll.u32 %s579, 4
          %s590 = int_to_ptr.vmem [resolvable:$true] %s589
          %592 = dma.vmem_to_hbm [thread:$0]  %s590, 128, %s587, %s576
        $region60: #{tpu_custom_call.1} parent=39 // pred_fallthru
          _
      $region40: #{tpu_custom_call.1} parent=5 // pred_fallthru
        _
      %p593 = scmp.le.s32.totalorder 2, %s19
      // Predicated region
      $region61: #{tpu_custom_call.1} parent=5 // pred_check
        %p594 = pneg %p593
      $region62: #{tpu_custom_call.1} parent=5 // pred_check_branch
        %596 = sbr.rel (%p594) target = $region64
      $region63: #{tpu_custom_call.1} parent=5 // pred_region
        %s597 = ssub.s32 %s19, 2
        // Predicated region
        $region65: #{tpu_custom_call.1} parent=63 // pred_check
          %p598 = pneg %p177
        $region66: #{tpu_custom_call.1} parent=63 // pred_check_branch
          %600 = sbr.rel (%p598) target = $region68
        $region67: #{tpu_custom_call.1} parent=63 // pred_region
          %s601 = sand.u32 %s162, 1
          %s602 = scalar_lea.sflag [#allocation4], %s601
          %s603 = sand.u32 %s162, 1
          %s604 = smul.addr %s603, 8
          %s605 = scalar_lea.vmem [#allocation10], %s604
          %606 = dma.done %s602, 128
        $region68: #{tpu_custom_call.1} parent=63 // pred_fallthru
          _
      $region64: #{tpu_custom_call.1} parent=5 // pred_fallthru
        _
    $region6: #{tpu_custom_call.1} parent=1 // loop_footer
      %s23 = sadd.s32 1, %s19
    $region7: #{tpu_custom_call.1} parent=1 // loop_footer_branch
      %18 = sbr.rel target = $region3
    $region8: #{tpu_custom_call.1} parent=1 // loop_exit
      _
    %607 = vsyncpa [#allocation3], 1
    %s608 = scalar_lea.sflag [#allocation3], 1
    %609 = vsyncpa %s608, 1
    %610 = vsyncpa [#allocation6], 1
    %611 = vsyncpa [#allocation9], 1
    %612 = vsyncpa [#allocation4], 1
    %s613 = scalar_lea.sflag [#allocation4], 1
    %614 = vsyncpa %s613, 1

</llo_original>
